<compile_context>
chip_gen: v6e
topology: v6e:2x2x1
jax: 0.10.0
libtpu: 0.0.40
codegen_flags: <defaults>
</compile_context>

<pallas_src>
import functools
from typing import NamedTuple

import jax
import jax.numpy as jnp
from jax.experimental import pallas as pl
from jax.experimental.pallas import tpu as pltpu


# ------------------------------ helpers -------------------------------------

LANE = 128
SUBLANE_BF16 = 16        # bf16 packs 16 sublanes per vreg -> pad batch to 16
DEFAULT_TILE_V = 2048    # decoder vocab tile; 2*(Hp*TILE_V)*2B stays well under v7x VMEM


def _round_up(x, m):
    return ((x + m - 1) // m) * m


def _vmem_limit(resident_bytes):
    """Scoped-VMEM budget: generous headroom over the computed residency, capped at
    v7x physical (64 MiB), floored at the v5e default (16 MiB)."""
    return int(min(max(3 * resident_bytes + (4 << 20), 16 << 20), 64 << 20))


class Dims(NamedTuple):
    V: int
    E: int
    H: int
    L: int
    Ep: int
    Hp: int
    Vp: int
    Inp: int
    TILE_V: int


# ------------------------------ GRU stack kernel -----------------------------

def gru_layer_kernel(emb_ref, h_ref, wih_ref, whh_ref, bih_ref, bhh_ref,
                     hout_ref, xout_ref, x_scr):
    """One GRU layer per grid step (layer axis is the grid; weights double-buffered).

    emb_ref : (Bp, Inp)     bf16   embedded tokens (resident, index constant)
    h_ref   : (1, Bp, Hp)   f32    previous hidden, layer l
    wih_ref : (1, Inp, 3Hp) bf16   input->gates weights (transposed, per-gate padded)
    whh_ref : (1, Hp, 3Hp)  bf16   hidden->gates weights
    bih_ref : (1, 1, 3Hp)   f32
    bhh_ref : (1, 1, 3Hp)   f32
    hout_ref: (1, Bp, Hp)   f32    new hidden, layer l (aliased with h input)
    xout_ref: (Bp, Hp)      bf16   final-layer activation (resident, written each step)
    x_scr   : (Bp, Inp)     bf16   activation carried across layers
    """
    l = pl.program_id(0)

    @pl.when(l == 0)
    def _():
        x_scr[...] = emb_ref[...]

    Hp = h_ref.shape[-1]
    x = x_scr[...]                                                  # (Bp, Inp) bf16
    h = h_ref[0]                                                    # (Bp, Hp)  f32
    gi = jnp.dot(x, wih_ref[0], preferred_element_type=jnp.float32) + bih_ref[0]
    gh = jnp.dot(h.astype(jnp.bfloat16), whh_ref[0],
                 preferred_element_type=jnp.float32) + bhh_ref[0]   # (Bp, 3Hp) f32
    # Gate slices at 128-aligned lane offsets (Hp is a multiple of 128).
    r = jax.nn.sigmoid(gi[:, 0:Hp] + gh[:, 0:Hp])
    z = jax.nn.sigmoid(gi[:, Hp:2 * Hp] + gh[:, Hp:2 * Hp])
    n = jnp.tanh(gi[:, 2 * Hp:3 * Hp] + r * gh[:, 2 * Hp:3 * Hp])
    h_new = (1.0 - z) * n + z * h                                   # f32 gate math
    hout_ref[0] = h_new
    xb = h_new.astype(jnp.bfloat16)
    x_scr[...] = xb
    xout_ref[...] = xb


def _gru_stack(emb, hidden_pad, w_ih, w_hh, b_ih, b_hh):
    L, Bp, Hp = hidden_pad.shape
    Inp = emb.shape[1]
    G = 3 * Hp

    flops = 2 * Bp * (Inp + Hp) * G * L
    bytes_accessed = (L * (Inp + Hp) * G * 2 + L * 2 * G * 4
                      + 2 * L * Bp * Hp * 4 + Bp * Inp * 2 + Bp * Hp * 2)
    resident = (Bp * Inp * 2                 # emb (resident)
                + 2 * Bp * Hp * 4            # hidden block x2 buffers
                + 2 * Inp * G * 2            # w_ih block x2
                + 2 * Hp * G * 2             # w_hh block x2
                + 4 * G * 4                  # biases x2 each
                + 2 * Bp * Hp * 4            # hout block x2
                + Bp * Hp * 2                # xout
                + Bp * Inp * 2               # x scratch
                + 2 * Bp * G * 4)            # gi/gh temporaries

    grid_spec = pltpu.PrefetchScalarGridSpec(
        num_scalar_prefetch=0,
        grid=(L,),
        in_specs=[
            pl.BlockSpec((Bp, Inp), lambda l: (0, 0)),
            pl.BlockSpec((1, Bp, Hp), lambda l: (l, 0, 0)),
            pl.BlockSpec((1, Inp, G), lambda l: (l, 0, 0)),
            pl.BlockSpec((1, Hp, G), lambda l: (l, 0, 0)),
            pl.BlockSpec((1, 1, G), lambda l: (l, 0, 0)),
            pl.BlockSpec((1, 1, G), lambda l: (l, 0, 0)),
        ],
        out_specs=(
            pl.BlockSpec((1, Bp, Hp), lambda l: (l, 0, 0)),
            pl.BlockSpec((Bp, Hp), lambda l: (0, 0)),
        ),
        scratch_shapes=[pltpu.VMEM((Bp, Inp), jnp.bfloat16)],
    )
    return pl.pallas_call(
        gru_layer_kernel,
        grid_spec=grid_spec,
        out_shape=(jax.ShapeDtypeStruct((L, Bp, Hp), jnp.float32),
                   jax.ShapeDtypeStruct((Bp, Hp), jnp.bfloat16)),
        input_output_aliases={1: 0},   # hidden (input #1) -> hout (output #0), in place
        compiler_params=pltpu.CompilerParams(
            dimension_semantics=("arbitrary",),
            vmem_limit_bytes=_vmem_limit(resident)),
        cost_estimate=pl.CostEstimate(flops=flops,
                                      transcendentals=3 * Bp * Hp * L,
                                      bytes_accessed=bytes_accessed),
    )(emb, hidden_pad, w_ih, w_hh, b_ih, b_hh)


# ------------------------------ decoder kernel -------------------------------

def decoder_kernel(x_ref, w_ref, b_ref, logits_ref, m_ref, s_ref):
    """One vocab tile per grid step ("parallel" axis -> both v7x TensorCores).

    x_ref     : (Bp, Hp)       bf16  final GRU activation (resident)
    w_ref     : (Hp, TILE_V)   bf16  decoder weight tile (transposed)
    b_ref     : (1, TILE_V)    f32   bias tile (padded vocab columns carry -1e30)
    logits_ref: (Bp, TILE_V)   f32   raw logits tile (lane-dense store)
    m_ref     : (1, Bp, 1)     f32   per-tile row max
    s_ref     : (1, Bp, 1)     f32   per-tile row sum exp(logit - max)
    """
    logits = jnp.dot(x_ref[...], w_ref[...],
                     preferred_element_type=jnp.float32) + b_ref[...]
    m = jnp.max(logits, axis=-1, keepdims=True)
    s = jnp.sum(jnp.exp(logits - m), axis=-1, keepdims=True)
    logits_ref[...] = logits
    m_ref[0] = m
    s_ref[0] = s


def _decoder(x, dec_w, dec_b, tile_v):
    Bp, Hp = x.shape
    Vp = dec_w.shape[1]
    nvt = Vp // tile_v

    flops = 2 * Bp * Hp * Vp
    bytes_accessed = Hp * Vp * 2 + Vp * 4 + Bp * Hp * 2 + Bp * Vp * 4 + 2 * nvt * Bp * 4
    resident = (Bp * Hp * 2
                + 2 * Hp * tile_v * 2        # dec_w tile x2 buffers
                + 2 * tile_v * 4             # bias tile x2
                + 2 * Bp * tile_v * 4        # logits tile x2
                + Bp * tile_v * 4            # exp temporary
                + 8 * Bp * 4)                # stats

    grid_spec = pltpu.PrefetchScalarGridSpec(
        num_scalar_prefetch=0,
        grid=(nvt,),
        in_specs=[
            pl.BlockSpec((Bp, Hp), lambda v: (0, 0)),
            pl.BlockSpec((Hp, tile_v), lambda v: (0, v)),
            pl.BlockSpec((1, tile_v), lambda v: (0, v)),
        ],
        out_specs=(
            pl.BlockSpec((Bp, tile_v), lambda v: (0, v)),
            pl.BlockSpec((1, Bp, 1), lambda v: (v, 0, 0)),
            pl.BlockSpec((1, Bp, 1), lambda v: (v, 0, 0)),
        ),
    )
    return pl.pallas_call(
        decoder_kernel,
        grid_spec=grid_spec,
        out_shape=(jax.ShapeDtypeStruct((Bp, Vp), jnp.float32),
                   jax.ShapeDtypeStruct((nvt, Bp, 1), jnp.float32),
                   jax.ShapeDtypeStruct((nvt, Bp, 1), jnp.float32)),
        compiler_params=pltpu.CompilerParams(
            dimension_semantics=("parallel",),
            vmem_limit_bytes=_vmem_limit(resident)),
        cost_estimate=pl.CostEstimate(flops=flops,
                                      transcendentals=Bp * Vp,
                                      bytes_accessed=bytes_accessed),
    )(x, dec_w, dec_b)


# ---------------------- parameter init / packing (once) ---------------------

def init_lm_params(key, vocab_size, embedding_dim, hidden_dim, num_layers,
                   tie_weights=True):
    """Raw f32 parameters mirroring the PyTorch module layout."""
    keys = jax.random.split(key, 2 + 4 * num_layers)
    k = iter(keys)
    params = {}
    params["embedding"] = jax.random.normal(next(k), (vocab_size, embedding_dim),
                                            jnp.float32) * 0.1
    bound = 1.0 / jnp.sqrt(hidden_dim)
    layers = []
    for l in range(num_layers):
        in_dim = embedding_dim if l == 0 else hidden_dim
        w_ih = jax.random.uniform(next(k), (3 * hidden_dim, in_dim),
                                  jnp.float32, -bound, bound)
        w_hh = jax.random.uniform(next(k), (3 * hidden_dim, hidden_dim),
                                  jnp.float32, -bound, bound)
        b_ih = jax.random.uniform(next(k), (3 * hidden_dim,),
                                  jnp.float32, -bound, bound)
        b_hh = jax.random.uniform(next(k), (3 * hidden_dim,),
                                  jnp.float32, -bound, bound)
        layers.append(dict(w_ih=w_ih, w_hh=w_hh, b_ih=b_ih, b_hh=b_hh))
    params["gru"] = layers
    if tie_weights:
        assert hidden_dim == embedding_dim
        params["dec_w"] = params["embedding"]            # (V, H), tied
    else:
        params["dec_w"] = jax.random.uniform(
            jax.random.PRNGKey(123), (vocab_size, hidden_dim),
            jnp.float32, -bound, bound)
    params["dec_b"] = jnp.zeros((vocab_size,), jnp.float32)
    return params


def prepare_params(raw, tile_v=DEFAULT_TILE_V):
    """One-time packing: transpose, per-gate pad to 128 lanes, stack layers, cast bf16."""
    V, E = raw["embedding"].shape
    L = len(raw["gru"])
    H = raw["gru"][0]["w_hh"].shape[1]
    Ep = _round_up(E, LANE)
    Hp = _round_up(H, LANE)
    assert Ep == Hp, "layer-grid kernel stacks per-layer weights; needs padded E == padded H"
    Inp = Ep
    # Decoder vocab tile (multiple of 128); Vp is padded to a whole number of tiles.
    TILE_V = min(_round_up(V, LANE), _round_up(tile_v, LANE))
    Vp = _round_up(V, TILE_V)

    emb_tab = jnp.pad(raw["embedding"], ((0, 0), (0, Ep - E))).astype(jnp.bfloat16)

    # TODO(synk): per-gate lane padding inflates GRU weight bytes when H % 128 != 0
    # (bandwidth-bound); for real configs require H % 128 == 0 or pack gates contiguously.
    def pack_w(w):                      # (3H, in_dim) -> (Inp, 3Hp) bf16
        in_dim = w.shape[1]
        wt = w.T                        # (in_dim, 3H)
        gates = [wt[:, g * H:(g + 1) * H] for g in range(3)]
        gates = [jnp.pad(g, ((0, Inp - in_dim), (0, Hp - H))) for g in gates]
        return jnp.concatenate(gates, axis=1).astype(jnp.bfloat16)

    def pack_b(b):                      # (3H,) -> (1, 3Hp) f32
        gates = [jnp.pad(b[g * H:(g + 1) * H], (0, Hp - H)) for g in range(3)]
        return jnp.concatenate(gates)[None, :].astype(jnp.float32)

    w_ih = jnp.stack([pack_w(lp["w_ih"]) for lp in raw["gru"]])   # (L, Inp, 3Hp)
    w_hh = jnp.stack([pack_w(lp["w_hh"]) for lp in raw["gru"]])   # (L, Hp, 3Hp)
    b_ih = jnp.stack([pack_b(lp["b_ih"]) for lp in raw["gru"]])   # (L, 1, 3Hp)
    b_hh = jnp.stack([pack_b(lp["b_hh"]) for lp in raw["gru"]])   # (L, 1, 3Hp)

    # TODO(synk): optional weight-byte halving: int8+scales on v5e/v6e, fp8 on v7x.
    dec_w = jnp.pad(raw["dec_w"].T, ((0, Hp - H), (0, Vp - V))).astype(jnp.bfloat16)
    dec_b = jnp.pad(raw["dec_b"], (0, Vp - V),
                    constant_values=-1e30)[None, :].astype(jnp.float32)

    prep = dict(emb_tab=emb_tab, w_ih=w_ih, w_hh=w_hh, b_ih=b_ih, b_hh=b_hh,
                dec_w=dec_w, dec_b=dec_b)
    dims = Dims(V=V, E=E, H=H, L=L, Ep=Ep, Hp=Hp, Vp=Vp, Inp=Inp, TILE_V=TILE_V)
    return prep, dims


def init_hidden(dims, batch_size):
    """Persistent padded hidden state (L, Bp, Hp); pad lanes stay zero across steps."""
    Bp = _round_up(batch_size, SUBLANE_BF16)
    return jnp.zeros((dims.L, Bp, dims.Hp), jnp.float32)


# --------------------------------- forward ----------------------------------

@functools.partial(jax.jit, static_argnames=("dims",))
def lm_forward(prep, tokens, hidden_pad, *, dims):
    """Pallas-backed LM.forward for one decode step (dropout = identity / eval).

    tokens    : (B,) int32
    hidden_pad: (L, Bp, Hp) f32 persistent padded hidden (from init_hidden / prev step).
                In a real decode loop donate this argument so the in-kernel
                input_output_aliases update is truly in place.
    returns   : (res, new_hidden_pad) with res (1, B, V) log-probs.
    """
    B = tokens.shape[0]
    Bp = hidden_pad.shape[1]
    assert Bp >= B

    # Embedding gather with the batch padding fused into the gather (padded rows read
    # row 0; they never mix with real rows and are sliced away).
    # TODO(synk): fold the gather into the GRU kernel (scalar-prefetch tokens + per-row
    # DMA from the HBM table) for a fully fused decode step.
    tok_pad = jnp.zeros((Bp,), jnp.int32).at[:B].set(tokens)
    emb = jnp.take(prep["emb_tab"], tok_pad, axis=0)                  # (Bp, Inp) bf16

    hout_pad, x_last = _gru_stack(emb, hidden_pad, prep["w_ih"], prep["w_hh"],
                                  prep["b_ih"], prep["b_hh"])
    logits, m_t, s_t = _decoder(x_last, prep["dec_w"], prep["dec_b"], dims.TILE_V)

    # Finish log_softmax from the per-tile stats (tiny reduction; keeps vocab tiles
    # independent so the decoder grid axis can be "parallel" across v7x TensorCores).
    m_glob = jnp.max(m_t, axis=0)                                     # (Bp, 1)
    lse = jnp.log(jnp.sum(s_t * jnp.exp(m_t - m_glob), axis=0)) + m_glob
    logp = logits - lse                                               # (Bp, Vp)

    res = logp[:B, :dims.V][None, :, :]                               # (1, B, V)
    return res, hout_pad


# --------------------------- pure-JAX reference ------------------------------

def lm_forward_ref(raw, tokens, hidden):
    """Same math on the same bf16-rounded weights, no padding, no Pallas."""
    emb_tab = raw["embedding"].astype(jnp.bfloat16)
    x = jnp.take(emb_tab, tokens, axis=0)
    new_hidden = []
    for l, lp in enumerate(raw["gru"]):
        h = hidden[l]
        gi = jnp.dot(x, lp["w_ih"].T.astype(jnp.bfloat16),
                     preferred_element_type=jnp.float32) + lp["b_ih"]
        gh = jnp.dot(h.astype(jnp.bfloat16), lp["w_hh"].T.astype(jnp.bfloat16),
                     preferred_element_type=jnp.float32) + lp["b_hh"]
        H = h.shape[1]
        r = jax.nn.sigmoid(gi[:, :H] + gh[:, :H])
        z = jax.nn.sigmoid(gi[:, H:2 * H] + gh[:, H:2 * H])
        n = jnp.tanh(gi[:, 2 * H:] + r * gh[:, 2 * H:])
        h_new = (1.0 - z) * n + z * h
        new_hidden.append(h_new)
        x = h_new.astype(jnp.bfloat16)
    logits = jnp.dot(x, raw["dec_w"].T.astype(jnp.bfloat16),
                     preferred_element_type=jnp.float32) + raw["dec_b"]
    logp = jax.nn.log_softmax(logits, axis=-1)
    return logp[None], jnp.stack(new_hidden)


# ----------------------------------- main ------------------------------------

if __name__ == "__main__":
    VOCAB = 64
    EMB = 32
    HID = 32
    LAYERS = 2
    BATCH = 8

    key = jax.random.PRNGKey(0)
    pkey, tkey, t2key = jax.random.split(key, 3)
    raw = init_lm_params(pkey, VOCAB, EMB, HID, LAYERS, tie_weights=True)
    prep, dims = prepare_params(raw)

    tokens = jax.random.randint(tkey, (BATCH,), 0, VOCAB, dtype=jnp.int32)
    hidden_pad = init_hidden(dims, BATCH)

    # --- step 1 ---
    res, hidden_pad1 = lm_forward(prep, tokens, hidden_pad, dims=dims)
    res = jax.block_until_ready(res)
    hidden_pad1 = jax.block_until_ready(hidden_pad1)

    hidden0 = jnp.zeros((LAYERS, BATCH, HID), jnp.float32)
    res_ref, hid_ref = lm_forward_ref(raw, tokens, hidden0)
    assert res.shape == (1, BATCH, VOCAB)
    assert hidden_pad1.shape == hidden_pad.shape
    assert jnp.allclose(res, res_ref, atol=2e-3, rtol=2e-3)
    assert jnp.allclose(hidden_pad1[:, :BATCH, :HID], hid_ref, atol=2e-3, rtol=2e-3)

    # --- step 2: reuse the persistent padded hidden state (in-place alias path) ---
    tokens2 = jax.random.randint(t2key, (BATCH,), 0, VOCAB, dtype=jnp.int32)
    res2, hidden_pad2 = lm_forward(prep, tokens2, hidden_pad1, dims=dims)
    res2 = jax.block_until_ready(res2)
    res2_ref, hid2_ref = lm_forward_ref(raw, tokens2, hid_ref)
    assert jnp.allclose(res2, res2_ref, atol=5e-3, rtol=5e-3)
    assert jnp.allclose(hidden_pad2[:, :BATCH, :HID], hid2_ref, atol=5e-3, rtol=5e-3)

    print("KERNEL_OK")
</pallas_src>

<mosaic_0001>
module attributes {stable_mosaic.version = 11 : i64} {
  func.func @decoder_kernel(%arg0: i32, %arg1: memref<16x128xbf16, #tpu.memory_space<vmem>>, %arg2: memref<128x128xbf16, #tpu.memory_space<vmem>>, %arg3: memref<1x128xf32, #tpu.memory_space<vmem>>, %arg4: memref<16x128xf32, #tpu.memory_space<vmem>>, %arg5: memref<1x16x1xf32, #tpu.memory_space<vmem>>, %arg6: memref<1x16x1xf32, #tpu.memory_space<vmem>>) attributes {dimension_semantics = [#tpu.dimension_semantics<parallel>], iteration_bounds = array<i64: 1>, scalar_prefetch = 0 : i64, scratch_operands = 0 : i64, tpu.core_type = #tpu.core_type<tc>, window_params = [{pipeline_mode = #tpu.pipeline_mode<synchronous>, transform_indices = @transform_0, window_bounds = array<i64: 16, 128>}, {transform_indices = @transform_1, window_bounds = array<i64: 128, 128>}, {transform_indices = @transform_2, window_bounds = array<i64: 1, 128>}, {transform_indices = @transform_3, window_bounds = array<i64: 16, 128>}, {transform_indices = @transform_4, window_bounds = array<i64: 1, 16, 1>}, {transform_indices = @transform_5, window_bounds = array<i64: 1, 16, 1>}]} {
    %c0 = arith.constant 0 : index
    %c0_0 = arith.constant 0 : index
    %0 = vector.load %arg1[%c0, %c0_0] : memref<16x128xbf16, #tpu.memory_space<vmem>>, vector<16x128xbf16>
    %c0_1 = arith.constant 0 : index
    %c0_2 = arith.constant 0 : index
    %1 = vector.load %arg2[%c0_1, %c0_2] : memref<128x128xbf16, #tpu.memory_space<vmem>>, vector<128x128xbf16>
    %cst = arith.constant dense<0.000000e+00> : vector<16x128xf32>
    %2 = tpu.matmul %0, %1, %cst {dimension_numbers = #tpu.dot_dimension_numbers<[1], [0], [0], [1], [0, 0, 1, 1], [], []>} : vector<16x128xbf16>, vector<128x128xbf16>, vector<16x128xf32> -> vector<16x128xf32>
    %c0_3 = arith.constant 0 : index
    %c0_4 = arith.constant 0 : index
    %3 = vector.load %arg3[%c0_3, %c0_4] : memref<1x128xf32, #tpu.memory_space<vmem>>, vector<1x128xf32>
    %4 = vector.broadcast %3 : vector<1x128xf32> to vector<16x128xf32>
    %5 = arith.addf %2, %4 : vector<16x128xf32>
    %cst_5 = arith.constant dense<0xFF800000> : vector<16xf32>
    %6 = vector.multi_reduction <maximumf>, %5, %cst_5 [1] : vector<16x128xf32> to vector<16xf32>
    %7 = vector.shape_cast %6 : vector<16xf32> to vector<16x1xf32>
    %8 = vector.broadcast %7 : vector<16x1xf32> to vector<16x128xf32>
    %9 = arith.subf %5, %8 : vector<16x128xf32>
    %10 = math.exp %9 : vector<16x128xf32>
    %cst_6 = arith.constant dense<0.000000e+00> : vector<16xf32>
    %11 = vector.multi_reduction <add>, %10, %cst_6 [1] : vector<16x128xf32> to vector<16xf32>
    %12 = vector.shape_cast %11 : vector<16xf32> to vector<16x1xf32>
    %c0_7 = arith.constant 0 : index
    %c0_8 = arith.constant 0 : index
    %13 = vector.load %arg4[%c0_7, %c0_8] : memref<16x128xf32, #tpu.memory_space<vmem>>, vector<16x128xf32>
    tpu.vector_store %arg4[%c0_7, %c0_8], %5 {strides = array<i32>} : memref<16x128xf32, #tpu.memory_space<vmem>>, vector<16x128xf32>,
    %c0_9 = arith.constant 0 : index
    %c0_10 = arith.constant 0 : index
    %c0_11 = arith.constant 0 : index
    %14 = vector.load %arg5[%c0_9, %c0_10, %c0_11] : memref<1x16x1xf32, #tpu.memory_space<vmem>>, vector<1x16x1xf32>
    %15 = vector.shape_cast %14 : vector<1x16x1xf32> to vector<16x1xf32>
    %16 = vector.shape_cast %7 : vector<16x1xf32> to vector<1x16x1xf32>
    tpu.vector_store %arg5[%c0_9, %c0_10, %c0_11], %16 {strides = array<i32>} : memref<1x16x1xf32, #tpu.memory_space<vmem>>, vector<1x16x1xf32>,
    %c0_12 = arith.constant 0 : index
    %c0_13 = arith.constant 0 : index
    %c0_14 = arith.constant 0 : index
    %17 = vector.load %arg6[%c0_12, %c0_13, %c0_14] : memref<1x16x1xf32, #tpu.memory_space<vmem>>, vector<1x16x1xf32>
    %18 = vector.shape_cast %17 : vector<1x16x1xf32> to vector<16x1xf32>
    %19 = vector.shape_cast %12 : vector<16x1xf32> to vector<1x16x1xf32>
    tpu.vector_store %arg6[%c0_12, %c0_13, %c0_14], %19 {strides = array<i32>} : memref<1x16x1xf32, #tpu.memory_space<vmem>>, vector<1x16x1xf32>,
    return
  }
  func.func @transform_0(%arg0: i32) -> (i32, i32) {
    %c0_i32 = arith.constant 0 : i32
    %c0_i32_0 = arith.constant 0 : i32
    %c0_i32_1 = arith.constant 0 : i32
    return %c0_i32, %c0_i32_0 : i32, i32
  }
  func.func @transform_1(%arg0: i32) -> (i32, i32) {
    %c0_i32 = arith.constant 0 : i32
    %c0_i32_0 = arith.constant 0 : i32
    return %c0_i32, %arg0 : i32, i32
  }
  func.func @transform_2(%arg0: i32) -> (i32, i32) {
    %c0_i32 = arith.constant 0 : i32
    %c0_i32_0 = arith.constant 0 : i32
    return %c0_i32, %arg0 : i32, i32
  }
  func.func @transform_3(%arg0: i32) -> (i32, i32) {
    %c0_i32 = arith.constant 0 : i32
    %c0_i32_0 = arith.constant 0 : i32
    return %c0_i32, %arg0 : i32, i32
  }
  func.func @transform_4(%arg0: i32) -> (i32, i32, i32) {
    %c0_i32 = arith.constant 0 : i32
    %c0_i32_0 = arith.constant 0 : i32
    %c0_i32_1 = arith.constant 0 : i32
    return %arg0, %c0_i32, %c0_i32_0 : i32, i32, i32
  }
  func.func @transform_5(%arg0: i32) -> (i32, i32, i32) {
    %c0_i32 = arith.constant 0 : i32
    %c0_i32_0 = arith.constant 0 : i32
    %c0_i32_1 = arith.constant 0 : i32
    return %arg0, %c0_i32, %c0_i32_0 : i32, i32, i32
  }
}

module attributes {stable_mosaic.version = 11 : i64} {
  func.func @gru_layer_kernel(%arg0: i32, %arg1: memref<16x128xbf16, #tpu.memory_space<vmem>>, %arg2: memref<1x16x128xf32, #tpu.memory_space<vmem>>, %arg3: memref<1x128x384xbf16, #tpu.memory_space<vmem>>, %arg4: memref<1x128x384xbf16, #tpu.memory_space<vmem>>, %arg5: memref<1x1x384xf32, #tpu.memory_space<vmem>>, %arg6: memref<1x1x384xf32, #tpu.memory_space<vmem>>, %arg7: memref<1x16x128xf32, #tpu.memory_space<vmem>>, %arg8: memref<16x128xbf16, #tpu.memory_space<vmem>>, %arg9: memref<16x128xbf16, #tpu.memory_space<vmem>>) attributes {dimension_semantics = [#tpu.dimension_semantics<arbitrary>], iteration_bounds = array<i64: 2>, scalar_prefetch = 0 : i64, scratch_operands = 1 : i64, tpu.core_type = #tpu.core_type<tc>, window_params = [{pipeline_mode = #tpu.pipeline_mode<synchronous>, transform_indices = @transform_0, window_bounds = array<i64: 16, 128>}, {transform_indices = @transform_1, window_bounds = array<i64: 1, 16, 128>}, {transform_indices = @transform_2, window_bounds = array<i64: 1, 128, 384>}, {transform_indices = @transform_3, window_bounds = array<i64: 1, 128, 384>}, {transform_indices = @transform_4, window_bounds = array<i64: 1, 1, 384>}, {transform_indices = @transform_5, window_bounds = array<i64: 1, 1, 384>}, {transform_indices = @transform_6, window_bounds = array<i64: 1, 16, 128>}, {pipeline_mode = #tpu.pipeline_mode<synchronous>, transform_indices = @transform_7, window_bounds = array<i64: 16, 128>}]} {
    %c0_i32 = arith.constant 0 : i32
    %0 = arith.cmpi eq, %arg0, %c0_i32 : i32
    %1 = arith.extui %0 : i1 to i32
    %c0_i32_0 = arith.constant 0 : i32
    %2 = arith.cmpi ne, %1, %c0_i32_0 : i32
    scf.if %2 {
      %c0_28 = arith.constant 0 : index
      %c0_29 = arith.constant 0 : index
      %53 = vector.load %arg1[%c0_28, %c0_29] : memref<16x128xbf16, #tpu.memory_space<vmem>>, vector<16x128xbf16>
      %c0_30 = arith.constant 0 : index
      %c0_31 = arith.constant 0 : index
      %54 = vector.load %arg9[%c0_30, %c0_31] : memref<16x128xbf16, #tpu.memory_space<vmem>>, vector<16x128xbf16>
      tpu.vector_store %arg9[%c0_30, %c0_31], %53 {strides = array<i32>} : memref<16x128xbf16, #tpu.memory_space<vmem>>, vector<16x128xbf16>,
    } else {
    }
    %c0 = arith.constant 0 : index
    %c0_1 = arith.constant 0 : index
    %3 = vector.load %arg9[%c0, %c0_1] : memref<16x128xbf16, #tpu.memory_space<vmem>>, vector<16x128xbf16>
    %c0_2 = arith.constant 0 : index
    %c0_3 = arith.constant 0 : index
    %c0_4 = arith.constant 0 : index
    %4 = vector.load %arg2[%c0_2, %c0_3, %c0_4] : memref<1x16x128xf32, #tpu.memory_space<vmem>>, vector<1x16x128xf32>
    %5 = vector.shape_cast %4 : vector<1x16x128xf32> to vector<16x128xf32>
    %c0_5 = arith.constant 0 : index
    %c0_6 = arith.constant 0 : index
    %c0_7 = arith.constant 0 : index
    %6 = vector.load %arg3[%c0_5, %c0_6, %c0_7] : memref<1x128x384xbf16, #tpu.memory_space<vmem>>, vector<1x128x384xbf16>
    %7 = vector.shape_cast %6 : vector<1x128x384xbf16> to vector<128x384xbf16>
    %cst = arith.constant dense<0.000000e+00> : vector<16x384xf32>
    %8 = tpu.matmul %3, %7, %cst {dimension_numbers = #tpu.dot_dimension_numbers<[1], [0], [0], [1], [0, 0, 1, 1], [], []>} : vector<16x128xbf16>, vector<128x384xbf16>, vector<16x384xf32> -> vector<16x384xf32>
    %c0_8 = arith.constant 0 : index
    %c0_9 = arith.constant 0 : index
    %c0_10 = arith.constant 0 : index
    %9 = vector.load %arg5[%c0_8, %c0_9, %c0_10] : memref<1x1x384xf32, #tpu.memory_space<vmem>>, vector<1x1x384xf32>
    %10 = vector.shape_cast %9 : vector<1x1x384xf32> to vector<1x384xf32>
    %11 = vector.broadcast %10 : vector<1x384xf32> to vector<16x384xf32>
    %12 = arith.addf %8, %11 : vector<16x384xf32>
    %13 = arith.truncf %5 : vector<16x128xf32> to vector<16x128xbf16>
    %c0_11 = arith.constant 0 : index
    %c0_12 = arith.constant 0 : index
    %c0_13 = arith.constant 0 : index
    %14 = vector.load %arg4[%c0_11, %c0_12, %c0_13] : memref<1x128x384xbf16, #tpu.memory_space<vmem>>, vector<1x128x384xbf16>
    %15 = vector.shape_cast %14 : vector<1x128x384xbf16> to vector<128x384xbf16>
    %cst_14 = arith.constant dense<0.000000e+00> : vector<16x384xf32>
    %16 = tpu.matmul %13, %15, %cst_14 {dimension_numbers = #tpu.dot_dimension_numbers<[1], [0], [0], [1], [0, 0, 1, 1], [], []>} : vector<16x128xbf16>, vector<128x384xbf16>, vector<16x384xf32> -> vector<16x384xf32>
    %c0_15 = arith.constant 0 : index
    %c0_16 = arith.constant 0 : index
    %c0_17 = arith.constant 0 : index
    %17 = vector.load %arg6[%c0_15, %c0_16, %c0_17] : memref<1x1x384xf32, #tpu.memory_space<vmem>>, vector<1x1x384xf32>
    %18 = vector.shape_cast %17 : vector<1x1x384xf32> to vector<1x384xf32>
    %19 = vector.broadcast %18 : vector<1x384xf32> to vector<16x384xf32>
    %20 = arith.addf %16, %19 : vector<16x384xf32>
    %21 = vector.extract_strided_slice %12 {offsets = [0, 0], sizes = [16, 128], strides = [1, 1]} : vector<16x384xf32> to vector<16x128xf32>
    %22 = vector.extract_strided_slice %20 {offsets = [0, 0], sizes = [16, 128], strides = [1, 1]} : vector<16x384xf32> to vector<16x128xf32>
    %23 = arith.addf %21, %22 : vector<16x128xf32>
    %24 = arith.negf %23 : vector<16x128xf32>
    %25 = math.exp %24 : vector<16x128xf32>
    %cst_18 = arith.constant 1.000000e+00 : f32
    %26 = vector.broadcast %cst_18 : f32 to vector<16x128xf32>
    %27 = arith.addf %26, %25 : vector<16x128xf32>
    %28 = arith.divf %26, %27 : vector<16x128xf32>
    %29 = vector.extract_strided_slice %12 {offsets = [0, 128], sizes = [16, 128], strides = [1, 1]} : vector<16x384xf32> to vector<16x128xf32>
    %30 = vector.extract_strided_slice %20 {offsets = [0, 128], sizes = [16, 128], strides = [1, 1]} : vector<16x384xf32> to vector<16x128xf32>
    %31 = arith.addf %29, %30 : vector<16x128xf32>
    %32 = arith.negf %31 : vector<16x128xf32>
    %33 = math.exp %32 : vector<16x128xf32>
    %cst_19 = arith.constant 1.000000e+00 : f32
    %34 = vector.broadcast %cst_19 : f32 to vector<16x128xf32>
    %35 = arith.addf %34, %33 : vector<16x128xf32>
    %36 = arith.divf %34, %35 : vector<16x128xf32>
    %37 = vector.extract_strided_slice %12 {offsets = [0, 256], sizes = [16, 128], strides = [1, 1]} : vector<16x384xf32> to vector<16x128xf32>
    %38 = vector.extract_strided_slice %20 {offsets = [0, 256], sizes = [16, 128], strides = [1, 1]} : vector<16x384xf32> to vector<16x128xf32>
    %39 = arith.mulf %28, %38 : vector<16x128xf32>
    %40 = arith.addf %37, %39 : vector<16x128xf32>
    %41 = math.tanh %40 : vector<16x128xf32>
    %cst_20 = arith.constant 1.000000e+00 : f32
    %42 = vector.broadcast %cst_20 : f32 to vector<16x128xf32>
    %43 = arith.subf %42, %36 : vector<16x128xf32>
    %44 = arith.mulf %43, %41 : vector<16x128xf32>
    %45 = arith.mulf %36, %5 : vector<16x128xf32>
    %46 = arith.addf %44, %45 : vector<16x128xf32>
    %c0_21 = arith.constant 0 : index
    %c0_22 = arith.constant 0 : index
    %c0_23 = arith.constant 0 : index
    %47 = vector.load %arg7[%c0_21, %c0_22, %c0_23] : memref<1x16x128xf32, #tpu.memory_space<vmem>>, vector<1x16x128xf32>
    %48 = vector.shape_cast %47 : vector<1x16x128xf32> to vector<16x128xf32>
    %49 = vector.shape_cast %46 : vector<16x128xf32> to vector<1x16x128xf32>
    tpu.vector_store %arg7[%c0_21, %c0_22, %c0_23], %49 {strides = array<i32>} : memref<1x16x128xf32, #tpu.memory_space<vmem>>, vector<1x16x128xf32>,
    %50 = arith.truncf %46 : vector<16x128xf32> to vector<16x128xbf16>
    %c0_24 = arith.constant 0 : index
    %c0_25 = arith.constant 0 : index
    %51 = vector.load %arg9[%c0_24, %c0_25] : memref<16x128xbf16, #tpu.memory_space<vmem>>, vector<16x128xbf16>
    tpu.vector_store %arg9[%c0_24, %c0_25], %50 {strides = array<i32>} : memref<16x128xbf16, #tpu.memory_space<vmem>>, vector<16x128xbf16>,
    %c0_26 = arith.constant 0 : index
    %c0_27 = arith.constant 0 : index
    %52 = vector.load %arg8[%c0_26, %c0_27] : memref<16x128xbf16, #tpu.memory_space<vmem>>, vector<16x128xbf16>
    tpu.vector_store %arg8[%c0_26, %c0_27], %50 {strides = array<i32>} : memref<16x128xbf16, #tpu.memory_space<vmem>>, vector<16x128xbf16>,
    return
  }
  func.func @transform_0(%arg0: i32) -> (i32, i32) {
    %c0_i32 = arith.constant 0 : i32
    %c0_i32_0 = arith.constant 0 : i32
    %c0_i32_1 = arith.constant 0 : i32
    return %c0_i32, %c0_i32_0 : i32, i32
  }
  func.func @transform_1(%arg0: i32) -> (i32, i32, i32) {
    %c0_i32 = arith.constant 0 : i32
    %c0_i32_0 = arith.constant 0 : i32
    %c0_i32_1 = arith.constant 0 : i32
    return %arg0, %c0_i32, %c0_i32_0 : i32, i32, i32
  }
  func.func @transform_2(%arg0: i32) -> (i32, i32, i32) {
    %c0_i32 = arith.constant 0 : i32
    %c0_i32_0 = arith.constant 0 : i32
    %c0_i32_1 = arith.constant 0 : i32
    return %arg0, %c0_i32, %c0_i32_0 : i32, i32, i32
  }
  func.func @transform_3(%arg0: i32) -> (i32, i32, i32) {
    %c0_i32 = arith.constant 0 : i32
    %c0_i32_0 = arith.constant 0 : i32
    %c0_i32_1 = arith.constant 0 : i32
    return %arg0, %c0_i32, %c0_i32_0 : i32, i32, i32
  }
  func.func @transform_4(%arg0: i32) -> (i32, i32, i32) {
    %c0_i32 = arith.constant 0 : i32
    %c0_i32_0 = arith.constant 0 : i32
    %c0_i32_1 = arith.constant 0 : i32
    return %arg0, %c0_i32, %c0_i32_0 : i32, i32, i32
  }
  func.func @transform_5(%arg0: i32) -> (i32, i32, i32) {
    %c0_i32 = arith.constant 0 : i32
    %c0_i32_0 = arith.constant 0 : i32
    %c0_i32_1 = arith.constant 0 : i32
    return %arg0, %c0_i32, %c0_i32_0 : i32, i32, i32
  }
  func.func @transform_6(%arg0: i32) -> (i32, i32, i32) {
    %c0_i32 = arith.constant 0 : i32
    %c0_i32_0 = arith.constant 0 : i32
    %c0_i32_1 = arith.constant 0 : i32
    return %arg0, %c0_i32, %c0_i32_0 : i32, i32, i32
  }
  func.func @transform_7(%arg0: i32) -> (i32, i32) {
    %c0_i32 = arith.constant 0 : i32
    %c0_i32_0 = arith.constant 0 : i32
    %c0_i32_1 = arith.constant 0 : i32
    return %c0_i32, %c0_i32_0 : i32, i32
  }
}

</mosaic_0001>

<llo_original>
// kernel: lm_forward.3
$region0: #{lm_forward.3}
  #allocation0 [shape = 'u32[]', space=smem, size = 0x4, offset = 0x4, fixed_abs, tag = 'smem constant byte address 0x4 - core index']
  #allocation1 [shape = 'u32[144,128]{1,0:T(1,128)}', space=vmem, size = 0x12000, scoped, tag = 'internal scratch']
  %s0 = inlined_call_operand.vmem [shape: bf16[16,128], index: 0, kind: input, shape index: {}]
  %s1 = inlined_call_operand.vmem [shape: bf16[128,128], index: 1, kind: input, shape index: {}]
  %s2 = inlined_call_operand.vmem [shape: f32[1,128], index: 2, kind: input, shape index: {}]
  %s3 = inlined_call_operand.vmem [shape: f32[16,128], index: 3, kind: output, shape index: {0}]
  %s4 = inlined_call_operand.vmem [shape: f32[1,16,1], index: 4, kind: output, shape index: {1}]
  %s5 = inlined_call_operand.vmem [shape: f32[1,16,1], index: 5, kind: output, shape index: {2}]
  %6 = xla_tuple %s3, %s4, %s5
  %s7 = sld [smem:[#allocation0]]
  $region38: #{lm_forward.3} parent=0
    _
  %s9 = ssub.s32 1, %s7
  %s10 = scalar_select 0, %s9, %s7
  // Predicated region
  $region2: #{lm_forward.3} parent=0 // pred_check
    _
  $region3: #{lm_forward.3} parent=0 // pred_check_branch
    %12 = sbr.rel (0) target = $region5
  $region4: #{lm_forward.3} parent=0 // pred_region
    _
  $region5: #{lm_forward.3} parent=0 // pred_fallthru
    _
  // Predicated region
  $region6: #{lm_forward.3} parent=0 // pred_check
    _
  $region7: #{lm_forward.3} parent=0 // pred_check_branch
    %14 = sbr.rel (0) target = $region9
  $region8: #{lm_forward.3} parent=0 // pred_region
    _
  $region9: #{lm_forward.3} parent=0 // pred_fallthru
    _
  // Predicated region
  $region10: #{lm_forward.3} parent=0 // pred_check
    _
  $region11: #{lm_forward.3} parent=0 // pred_check_branch
    %16 = sbr.rel (0) target = $region13
  $region12: #{lm_forward.3} parent=0 // pred_region
    _
  $region13: #{lm_forward.3} parent=0 // pred_fallthru
    _
  %v18 = vld [vmem:[%s0] sm:$0xf]
  %v19 = vld [vmem:[%s0 + $0x4] sm:$0xf]
  %v20 = vld [vmem:[%s1] sm:$0xf]
  %v21 = vld [vmem:[%s1 + $0x4] sm:$0xf]
  %v22 = vld [vmem:[%s1 + $0x8] sm:$0xf]
  %v23 = vld [vmem:[%s1 + $0xc] sm:$0xf]
  %v24 = vld [vmem:[%s1 + $0x10] sm:$0xf]
  %v25 = vld [vmem:[%s1 + $0x14] sm:$0xf]
  %v26 = vld [vmem:[%s1 + $0x18] sm:$0xf]
  %v27 = vld [vmem:[%s1 + $0x1c] sm:$0xf]
  %v28 = vld [vmem:[%s1 + $0x20] sm:$0xf]
  %v29 = vld [vmem:[%s1 + $0x24] sm:$0xf]
  %v30 = vld [vmem:[%s1 + $0x28] sm:$0xf]
  %v31 = vld [vmem:[%s1 + $0x2c] sm:$0xf]
  %v32 = vld [vmem:[%s1 + $0x30] sm:$0xf]
  %v33 = vld [vmem:[%s1 + $0x34] sm:$0xf]
  %v34 = vld [vmem:[%s1 + $0x38] sm:$0xf]
  %v35 = vld [vmem:[%s1 + $0x3c] sm:$0xf]
  %v36 = vld [vmem:[%s2] sm:$0x1]
  %v38 = vlaneseq
  %v39 = vshrl.u32 %v38, 7
  %v40 = vsub.s32 0, %v39
  %v41 = vrot.slane %v36, %v40
  %v45 = vunpack.c.l.b16 %v18
  %v46 = vunpack.c.l.b16 %v19
  %v47 = vpack.c.b16 %v46, %v45
  %v65 = vunpack.c.l.b16 %v20
  %v66 = vunpack.c.l.b16 %v21
  %v67 = vunpack.c.l.b16 %v22
  %v68 = vunpack.c.l.b16 %v23
  %v69 = vunpack.c.l.b16 %v24
  %v70 = vunpack.c.l.b16 %v25
  %v71 = vunpack.c.l.b16 %v26
  %v72 = vunpack.c.l.b16 %v27
  %v73 = vunpack.c.l.b16 %v28
  %v74 = vunpack.c.l.b16 %v29
  %v75 = vunpack.c.l.b16 %v30
  %v76 = vunpack.c.l.b16 %v31
  %v77 = vunpack.c.l.b16 %v32
  %v78 = vunpack.c.l.b16 %v33
  %v79 = vunpack.c.l.b16 %v34
  %v80 = vunpack.c.l.b16 %v35
  %v81 = vpack.c.b16 %v66, %v65
  %v82 = vpack.c.b16 %v68, %v67
  %v83 = vpack.c.b16 %v70, %v69
  %v84 = vpack.c.b16 %v72, %v71
  %v85 = vpack.c.b16 %v74, %v73
  %v86 = vpack.c.b16 %v76, %v75
  %v87 = vpack.c.b16 %v78, %v77
  %v88 = vpack.c.b16 %v80, %v79
  %97 = vmatprep.subr.bf16.mxu0 0
  %98 = vmatpush1.bf16.msra.mxu0 %v88
  %99 = vmatprep.subr.bf16.mxu0 0
  %100 = vmatpush1.bf16.msra.mxu0 %v87
  %101 = vmatprep.subr.bf16.mxu0 0
  %102 = vmatpush1.bf16.msra.mxu0 %v86
  %103 = vmatprep.subr.bf16.mxu0 0
  %104 = vmatpush1.bf16.msra.mxu0 %v85
  %105 = vmatprep.subr.bf16.mxu0 0
  %106 = vmatpush1.bf16.msra.mxu0 %v84
  %107 = vmatprep.subr.bf16.mxu0 0
  %108 = vmatpush1.bf16.msra.mxu0 %v83
  %109 = vmatprep.subr.bf16.mxu0 0
  %110 = vmatpush1.bf16.msra.mxu0 %v82
  %111 = vmatprep.subr.bf16.mxu0 0
  %112 = vmatpush1.bf16.msra.mxu0 %v81
  %113 = vmatprep.subr.bf16.mxu0 0
  %114 = vmatpush2.bf16.msra.mxu0 0
  %115 = vmatprep.subr.bf16.mxu0 0
  %116 = vmatpush2.bf16.msra.mxu0 0
  %117 = vmatprep.subr.bf16.mxu0 0
  %118 = vmatpush2.bf16.msra.mxu0 0
  %119 = vmatprep.subr.bf16.mxu0 0
  %120 = vmatpush2.bf16.msra.mxu0 0
  %121 = vmatprep.subr.bf16.mxu0 0
  %122 = vmatpush2.bf16.msra.mxu0 0
  %123 = vmatprep.subr.bf16.mxu0 0
  %124 = vmatpush2.bf16.msra.mxu0 0
  %125 = vmatprep.subr.bf16.mxu0 0
  %126 = vmatpush2.bf16.msra.mxu0 0
  %127 = vmatprep.subr.bf16.mxu0 0
  %128 = vmatpush2.bf16.msra.mxu0 0
  %129 = vmatprep.mubr.bf16.mxu0 0
  %130 = vmatmul.mubr.bf16.gmra.mxu0 %v47
  %v131 = vpop.f32.mrf.mxu0
  %v132 = vadd.f32 %v41, %v131
  %v133 = vpop.f32.mrf.mxu0
  %v134 = vpop.f32.mrf.mxu0
  %v135 = vadd.f32 %v41, %v134
  %v136 = vpop.f32.mrf.mxu0
  %137 = vdwg.mxu0
  %138 = vmax.xlane.f32.xlu0 %v132
  %v139 = vpop.xlane.xlu0 %138
  %140 = vmax.xlane.f32.xlu0 %v135
  %v141 = vpop.xlane.xlu0 %140
  %v142 = vsub.f32 %v132, %v139
  %v143 = vsub.f32 %v135, %v141
  %v144 = vmul.f32 %v142, 1.442695
  %v145 = vpow.pop %v144
  %v146 = vmul.f32 %v143, 1.442695
  %v147 = vpow.pop %v146
  %148 = vadd.xlane.f32.xlu0 %v145
  %v149 = vpop.xlane.xlu0 %148
  %150 = vadd.xlane.f32.xlu0 %v147
  %v151 = vpop.xlane.xlu0 %150
  %152 = vst [vmem:[%s3] sm:$0xff] %v132
  %153 = vst [vmem:[%s3 + $0x8] sm:$0xff] %v135
  %vm154 = vcmask 7168
  %155 = vst.msk [vmem:[%s4] sm:$0xff] %vm154, %v139
  %156 = vst.msk [vmem:[%s4 + $0x8] sm:$0xff] %vm154, %v141
  %157 = vst.msk [vmem:[%s5] sm:$0xff] %vm154, %v149
  %158 = vst.msk [vmem:[%s5 + $0x8] sm:$0xff] %vm154, %v151
  // Predicated region
  $region14: #{lm_forward.3} parent=0 // pred_check
    _
  $region15: #{lm_forward.3} parent=0 // pred_check_branch
    %160 = sbr.rel (0) target = $region17
  $region16: #{lm_forward.3} parent=0 // pred_region
    _
  $region17: #{lm_forward.3} parent=0 // pred_fallthru
    _
  // Predicated region
  $region18: #{lm_forward.3} parent=0 // pred_check
    _
  $region19: #{lm_forward.3} parent=0 // pred_check_branch
    %162 = sbr.rel (0) target = $region21
  $region20: #{lm_forward.3} parent=0 // pred_region
    _
  $region21: #{lm_forward.3} parent=0 // pred_fallthru
    _
  // Predicated region
  $region22: #{lm_forward.3} parent=0 // pred_check
    _
  $region23: #{lm_forward.3} parent=0 // pred_check_branch
    %164 = sbr.rel (0) target = $region25
  $region24: #{lm_forward.3} parent=0 // pred_region
    _
  $region25: #{lm_forward.3} parent=0 // pred_fallthru
    _
  // Predicated region
  $region26: #{lm_forward.3} parent=0 // pred_check
    _
  $region27: #{lm_forward.3} parent=0 // pred_check_branch
    %166 = sbr.rel (0) target = $region29
  $region28: #{lm_forward.3} parent=0 // pred_region
    _
  $region29: #{lm_forward.3} parent=0 // pred_fallthru
    _
  // Predicated region
  $region30: #{lm_forward.3} parent=0 // pred_check
    _
  $region31: #{lm_forward.3} parent=0 // pred_check_branch
    %168 = sbr.rel (0) target = $region33
  $region32: #{lm_forward.3} parent=0 // pred_region
    _
  $region33: #{lm_forward.3} parent=0 // pred_fallthru
    _
  // Predicated region
  $region34: #{lm_forward.3} parent=0 // pred_check
    _
  $region35: #{lm_forward.3} parent=0 // pred_check_branch
    %170 = sbr.rel (0) target = $region37
  $region36: #{lm_forward.3} parent=0 // pred_region
    _
  $region37: #{lm_forward.3} parent=0 // pred_fallthru
    _

// kernel: lm_forward.2
$region0: #{lm_forward.2}
  #allocation0 [shape = 'u32[]', space=smem, size = 0x4, offset = 0x4, fixed_abs, tag = 'smem constant byte address 0x4 - core index']
  #allocation1 [shape = 'u32[144,128]{1,0:T(1,128)}', space=vmem, size = 0x12000, scoped, tag = 'internal scratch']
  #allocation2 [shape = 'bf16[16,128]{1,0:T(8,128)(2,1)}', space=vmem, size = 0x1000, scoped, tag = 'scratch operand']
  %s0 = inlined_call_operand.vmem [shape: bf16[16,128], index: 0, kind: input, shape index: {}]
  %s1 = inlined_call_operand.vmem [shape: f32[2,16,128], index: 1, kind: input, shape index: {}, may-alias: {1,6}]
  %s2 = inlined_call_operand.hbm [shape: bf16[2,128,384], index: 2, kind: input, shape index: {}]
  %s3 = inlined_call_operand.hbm [shape: bf16[2,128,384], index: 3, kind: input, shape index: {}]
  %s4 = inlined_call_operand.vmem [shape: f32[2,1,384], index: 4, kind: input, shape index: {}]
  %s5 = inlined_call_operand.vmem [shape: f32[2,1,384], index: 5, kind: input, shape index: {}]
  %s6 = inlined_call_operand.vmem [shape: f32[2,16,128], index: 6, kind: output, shape index: {0}, may-alias: {1,6}]
  %s7 = inlined_call_operand.vmem [shape: bf16[16,128], index: 7, kind: output, shape index: {1}]
  %8 = xla_tuple %s6, %s7
  %s9 = sld [smem:[#allocation0]]
  $region77: #{lm_forward.2} parent=0
    _
  %s11 = ssub.s32 1, %s9
  %s12 = scalar_select 0, %s11, %s9
  $region1: #{lm_forward.2} parent=0
    #allocation3 [shape = 'u8[196608]{0}', space=vmem, size = 0x30000, scoped, tag = 'input window, operand 2']
    #allocation4 [shape = 's32[2]{0}', space=sflag, size = 0x8, scoped, tag = 'scoped memory for lm_forward.2']
    #allocation5 [shape = 'u8[196608]{0}', space=vmem, size = 0x30000, scoped, tag = 'input window, operand 3']
    #allocation6 [shape = 's32[2]{0}', space=sflag, size = 0x8, scoped, tag = 'scoped memory for lm_forward.2']
    %13 = vsyncpa [#allocation4], 0
    %s14 = scalar_lea.sflag [#allocation4], 1
    %15 = vsyncpa %s14, 0
    %16 = vsyncpa [#allocation6], 0
    %s17 = scalar_lea.sflag [#allocation6], 1
    %18 = vsyncpa %s17, 0
    loop: start=0, step=1, limit=4
    $region2: #{lm_forward.2} parent=1 // loop_pre_header
      _
    $region3: #{lm_forward.2} parent=1 // loop_header
      %s20 = sphi 0, %s24
      %p21 = scmp.ge.s32.totalorder %s20, 4
      %s28 = sphi 0, %s28
      %s30 = sphi 0, %s28
      %s31 = sphi 0, %s30
      %s45 = sphi 0, %s31
      %s51 = sphi 0, %s53
      %s54 = sphi 0, %s51
      %s55 = sphi 0, %s54
      %s71 = sphi 0, %s55
      %s77 = sphi 0, %s79
      %s80 = sphi 0, %s77
      %s81 = sphi 0, %s80
      %s97 = sphi 0, %s81
      %s103 = sphi 0, %s105
      %s106 = sphi 0, %s103
      %s107 = sphi 0, %s106
      %s123 = sphi 0, %s107
      %s129 = sphi 0, %s131
      %s132 = sphi 0, %s129
      %s133 = sphi 0, %s132
      %s149 = sphi 0, %s133
      %s155 = sphi 0, %s157
      %s158 = sphi 0, %s155
      %s159 = sphi 0, %s158
      %s175 = sphi 0, %s159
      %s181 = sphi 0, %s183
      %s184 = sphi 0, %s181
      %s185 = sphi 0, %s184
      %s201 = sphi 0, %s185
      %s205 = sphi 0, %s205
      %s207 = sphi 0, %s205
      %s208 = sphi 0, %s207
      %s222 = sphi 0, %s208
    $region4: #{lm_forward.2} parent=1 // loop_header_branch
      %23 = sbr.rel (%p21) target = $region8
    $region5: #{lm_forward.2} parent=1 // loop_body
      %s25 = ssub.s32 %s20, 1
      %s26 = ssub.s32 %s20, 2
      %s27 = sadd.s32 %s20, 1
      %s29 = sadd.s32 %s28, 1
      %p32 = scmp.eq.s32.totalorder %s20, 1
      %p33 = scmp.ne.s32.totalorder %s28, %s30
      %p34 = scmp.eq.s32.totalorder %s20, 0
      %p35 = por %p33, %p34
      %p36 = scmp.ne.s32.totalorder %s28, %s30
      %p37 = scmp.eq.s32.totalorder %s25, 1
      %p38 = por %p36, %p37
      %p39 = scmp.ne.s32.totalorder %s30, %s31
      %p40 = scmp.eq.s32.totalorder %s25, 0
      %p41 = por %p39, %p40
      %p42 = scmp.ne.s32.totalorder %s30, %s31
      %p43 = scmp.eq.s32.totalorder %s26, 1
      %p44 = por %p42, %p43
      %p46 = scmp.ne.s32.totalorder %s31, %s45
      %p47 = scmp.eq.s32.totalorder %s26, 0
      %p48 = por %p46, %p47
      %s49 = ssub.s32 %s20, %s27
      %p50 = scmp.eq.s32.totalorder %s49, 0
      %s52 = sadd.s32 %s51, 1
      %s53 = scalar_select %p50, %s51, %s52
      %p56 = pneg %p50
      %p57 = scmp.eq.s32.totalorder %s20, 1
      %p58 = por %p56, %p57
      %p59 = scmp.ne.s32.totalorder %s51, %s54
      %p60 = scmp.eq.s32.totalorder %s20, 0
      %p61 = por %p59, %p60
      %p62 = scmp.ne.s32.totalorder %s51, %s54
      %p63 = scmp.eq.s32.totalorder %s25, 1
      %p64 = por %p62, %p63
      %p65 = scmp.ne.s32.totalorder %s54, %s55
      %p66 = scmp.eq.s32.totalorder %s25, 0
      %p67 = por %p65, %p66
      %p68 = scmp.ne.s32.totalorder %s54, %s55
      %p69 = scmp.eq.s32.totalorder %s26, 1
      %p70 = por %p68, %p69
      %p72 = scmp.ne.s32.totalorder %s55, %s71
      %p73 = scmp.eq.s32.totalorder %s26, 0
      %p74 = por %p72, %p73
      %s75 = ssub.s32 %s20, %s27
      %p76 = scmp.eq.s32.totalorder %s75, 0
      %s78 = sadd.s32 %s77, 1
      %s79 = scalar_select %p76, %s77, %s78
      %p82 = pneg %p76
      %p83 = scmp.eq.s32.totalorder %s20, 1
      %p84 = por %p82, %p83
      %p85 = scmp.ne.s32.totalorder %s77, %s80
      %p86 = scmp.eq.s32.totalorder %s20, 0
      %p87 = por %p85, %p86
      %p88 = scmp.ne.s32.totalorder %s77, %s80
      %p89 = scmp.eq.s32.totalorder %s25, 1
      %p90 = por %p88, %p89
      %p91 = scmp.ne.s32.totalorder %s80, %s81
      %p92 = scmp.eq.s32.totalorder %s25, 0
      %p93 = por %p91, %p92
      %p94 = scmp.ne.s32.totalorder %s80, %s81
      %p95 = scmp.eq.s32.totalorder %s26, 1
      %p96 = por %p94, %p95
      %p98 = scmp.ne.s32.totalorder %s81, %s97
      %p99 = scmp.eq.s32.totalorder %s26, 0
      %p100 = por %p98, %p99
      %s101 = ssub.s32 %s20, %s27
      %p102 = scmp.eq.s32.totalorder %s101, 0
      %s104 = sadd.s32 %s103, 1
      %s105 = scalar_select %p102, %s103, %s104
      %p108 = pneg %p102
      %p109 = scmp.eq.s32.totalorder %s20, 1
      %p110 = por %p108, %p109
      %p111 = scmp.ne.s32.totalorder %s103, %s106
      %p112 = scmp.eq.s32.totalorder %s20, 0
      %p113 = por %p111, %p112
      %p114 = scmp.ne.s32.totalorder %s103, %s106
      %p115 = scmp.eq.s32.totalorder %s25, 1
      %p116 = por %p114, %p115
      %p117 = scmp.ne.s32.totalorder %s106, %s107
      %p118 = scmp.eq.s32.totalorder %s25, 0
      %p119 = por %p117, %p118
      %p120 = scmp.ne.s32.totalorder %s106, %s107
      %p121 = scmp.eq.s32.totalorder %s26, 1
      %p122 = por %p120, %p121
      %p124 = scmp.ne.s32.totalorder %s107, %s123
      %p125 = scmp.eq.s32.totalorder %s26, 0
      %p126 = por %p124, %p125
      %s127 = ssub.s32 %s20, %s27
      %p128 = scmp.eq.s32.totalorder %s127, 0
      %s130 = sadd.s32 %s129, 1
      %s131 = scalar_select %p128, %s129, %s130
      %p134 = pneg %p128
      %p135 = scmp.eq.s32.totalorder %s20, 1
      %p136 = por %p134, %p135
      %p137 = scmp.ne.s32.totalorder %s129, %s132
      %p138 = scmp.eq.s32.totalorder %s20, 0
      %p139 = por %p137, %p138
      %p140 = scmp.ne.s32.totalorder %s129, %s132
      %p141 = scmp.eq.s32.totalorder %s25, 1
      %p142 = por %p140, %p141
      %p143 = scmp.ne.s32.totalorder %s132, %s133
      %p144 = scmp.eq.s32.totalorder %s25, 0
      %p145 = por %p143, %p144
      %p146 = scmp.ne.s32.totalorder %s132, %s133
      %p147 = scmp.eq.s32.totalorder %s26, 1
      %p148 = por %p146, %p147
      %p150 = scmp.ne.s32.totalorder %s133, %s149
      %p151 = scmp.eq.s32.totalorder %s26, 0
      %p152 = por %p150, %p151
      %s153 = ssub.s32 %s20, %s27
      %p154 = scmp.eq.s32.totalorder %s153, 0
      %s156 = sadd.s32 %s155, 1
      %s157 = scalar_select %p154, %s155, %s156
      %p160 = pneg %p154
      %p161 = scmp.eq.s32.totalorder %s20, 1
      %p162 = por %p160, %p161
      %p163 = scmp.ne.s32.totalorder %s155, %s158
      %p164 = scmp.eq.s32.totalorder %s20, 0
      %p165 = por %p163, %p164
      %p166 = scmp.ne.s32.totalorder %s155, %s158
      %p167 = scmp.eq.s32.totalorder %s25, 1
      %p168 = por %p166, %p167
      %p169 = scmp.ne.s32.totalorder %s158, %s159
      %p170 = scmp.eq.s32.totalorder %s25, 0
      %p171 = por %p169, %p170
      %p172 = scmp.ne.s32.totalorder %s158, %s159
      %p173 = scmp.eq.s32.totalorder %s26, 1
      %p174 = por %p172, %p173
      %p176 = scmp.ne.s32.totalorder %s159, %s175
      %p177 = scmp.eq.s32.totalorder %s26, 0
      %p178 = por %p176, %p177
      %s179 = ssub.s32 %s20, %s27
      %p180 = scmp.eq.s32.totalorder %s179, 0
      %s182 = sadd.s32 %s181, 1
      %s183 = scalar_select %p180, %s181, %s182
      %p186 = pneg %p180
      %p187 = scmp.eq.s32.totalorder %s20, 1
      %p188 = por %p186, %p187
      %p189 = scmp.ne.s32.totalorder %s181, %s184
      %p190 = scmp.eq.s32.totalorder %s20, 0
      %p191 = por %p189, %p190
      %p192 = scmp.ne.s32.totalorder %s181, %s184
      %p193 = scmp.eq.s32.totalorder %s25, 1
      %p194 = por %p192, %p193
      %p195 = scmp.ne.s32.totalorder %s184, %s185
      %p196 = scmp.eq.s32.totalorder %s25, 0
      %p197 = por %p195, %p196
      %p198 = scmp.ne.s32.totalorder %s184, %s185
      %p199 = scmp.eq.s32.totalorder %s26, 1
      %p200 = por %p198, %p199
      %p202 = scmp.ne.s32.totalorder %s185, %s201
      %p203 = scmp.eq.s32.totalorder %s26, 0
      %p204 = por %p202, %p203
      %s206 = sadd.s32 %s205, 1
      %p209 = scmp.eq.s32.totalorder %s20, 1
      %p210 = scmp.ne.s32.totalorder %s205, %s207
      %p211 = scmp.eq.s32.totalorder %s20, 0
      %p212 = por %p210, %p211
      %p213 = scmp.ne.s32.totalorder %s205, %s207
      %p214 = scmp.eq.s32.totalorder %s25, 1
      %p215 = por %p213, %p214
      %p216 = scmp.ne.s32.totalorder %s207, %s208
      %p217 = scmp.eq.s32.totalorder %s25, 0
      %p218 = por %p216, %p217
      %p219 = scmp.ne.s32.totalorder %s207, %s208
      %p220 = scmp.eq.s32.totalorder %s26, 1
      %p221 = por %p219, %p220
      %p223 = scmp.ne.s32.totalorder %s208, %s222
      %p224 = scmp.eq.s32.totalorder %s26, 0
      %p225 = por %p223, %p224
      %p226 = scmp.le.s32.totalorder 1, %s20
      %p227 = scmp.lt.s32.totalorder %s20, 3
      %p228 = pnand %p226, %p227
      %p229 = pneg %p228
      // Predicated region
      $region9: #{lm_forward.2} parent=5 // pred_check
        _
      $region10: #{lm_forward.2} parent=5 // pred_check_branch
        %231 = sbr.rel (%p228) target = $region12
      $region11: #{lm_forward.2} parent=5 // pred_region
        %s232 = ssub.s32 %s20, 1
        // Predicated region
        $region13: #{lm_forward.2} parent=11 // pred_check
          %p233 = pneg %p41
        $region14: #{lm_forward.2} parent=11 // pred_check_branch
          %235 = sbr.rel (%p233) target = $region16
        $region15: #{lm_forward.2} parent=11 // pred_region
          _
        $region16: #{lm_forward.2} parent=11 // pred_fallthru
          _
      $region12: #{lm_forward.2} parent=5 // pred_fallthru
        _
      %p236 = scmp.lt.s32.totalorder %s20, 2
      // Predicated region
      $region17: #{lm_forward.2} parent=5 // pred_check
        %p237 = pneg %p236
      $region18: #{lm_forward.2} parent=5 // pred_check_branch
        %239 = sbr.rel (%p237) target = $region20
      $region19: #{lm_forward.2} parent=5 // pred_region
        // Predicated region
        $region21: #{lm_forward.2} parent=19 // pred_check
          %p240 = pneg %p61
        $region22: #{lm_forward.2} parent=19 // pred_check_branch
          %242 = sbr.rel (%p240) target = $region24
        $region23: #{lm_forward.2} parent=19 // pred_region
          %p243 = scmp.lt.s32.totalorder %s20, 1
          %s244 = scalar_select %p243, %s20, 1
          %s245 = smul.addr %s244, 2
          %s246 = smul.addr %s245, 8
          %s247 = scalar_lea.vmem %s1, %s246
        $region24: #{lm_forward.2} parent=19 // pred_fallthru
          _
        // Predicated region
        $region25: #{lm_forward.2} parent=19 // pred_check
          %p248 = pneg %p87
        $region26: #{lm_forward.2} parent=19 // pred_check_branch
          %250 = sbr.rel (%p248) target = $region28
        $region27: #{lm_forward.2} parent=19 // pred_region
          %s251 = sand.u32 %s77, 1
          %s252 = scalar_lea.sflag [#allocation4], %s251
          %s253 = sand.u32 %s77, 1
          %s254 = smul.addr %s253, 192
          %s255 = scalar_lea.vmem [#allocation3], %s254
          %s257 = ssub.s32 3072, 3072
          %258 = vsyncadd %s252, %s257
          %s259 = smul.addr %s20, 48
          %s260 = smul.addr %s259, 64
          %s261 = scalar_lea.hbm %s2, %s260
          %s262 = sshll.u32 %s255, 4
          %s263 = int_to_ptr.vmem [resolvable:$true] %s262
          %268 = dma.hbm_to_vmem [thread:$0]  %s261, 3072, %s263, %s252, 192, 192, 12
        $region28: #{lm_forward.2} parent=19 // pred_fallthru
          _
        // Predicated region
        $region29: #{lm_forward.2} parent=19 // pred_check
          %p269 = pneg %p113
        $region30: #{lm_forward.2} parent=19 // pred_check_branch
          %271 = sbr.rel (%p269) target = $region32
        $region31: #{lm_forward.2} parent=19 // pred_region
          %s272 = sand.u32 %s103, 1
          %s273 = scalar_lea.sflag [#allocation6], %s272
          %s274 = sand.u32 %s103, 1
          %s275 = smul.addr %s274, 192
          %s276 = scalar_lea.vmem [#allocation5], %s275
          %s278 = ssub.s32 3072, 3072
          %279 = vsyncadd %s273, %s278
          %s280 = smul.addr %s20, 48
          %s281 = smul.addr %s280, 64
          %s282 = scalar_lea.hbm %s3, %s281
          %s283 = sshll.u32 %s276, 4
          %s284 = int_to_ptr.vmem [resolvable:$true] %s283
          %289 = dma.hbm_to_vmem [thread:$0]  %s282, 3072, %s284, %s273, 192, 192, 12
        $region32: #{lm_forward.2} parent=19 // pred_fallthru
          _
        // Predicated region
        $region33: #{lm_forward.2} parent=19 // pred_check
          %p290 = pneg %p139
        $region34: #{lm_forward.2} parent=19 // pred_check_branch
          %292 = sbr.rel (%p290) target = $region36
        $region35: #{lm_forward.2} parent=19 // pred_region
          %p293 = scmp.lt.s32.totalorder %s20, 1
          %s294 = scalar_select %p293, %s20, 1
          %s295 = smul.addr %s294, 3
          %s296 = scalar_lea.vmem %s4, %s295
        $region36: #{lm_forward.2} parent=19 // pred_fallthru
          _
        // Predicated region
        $region37: #{lm_forward.2} parent=19 // pred_check
          %p297 = pneg %p165
        $region38: #{lm_forward.2} parent=19 // pred_check_branch
          %299 = sbr.rel (%p297) target = $region40
        $region39: #{lm_forward.2} parent=19 // pred_region
          %p300 = scmp.lt.s32.totalorder %s20, 1
          %s301 = scalar_select %p300, %s20, 1
          %s302 = smul.addr %s301, 3
          %s303 = scalar_lea.vmem %s5, %s302
        $region40: #{lm_forward.2} parent=19 // pred_fallthru
          _
      $region20: #{lm_forward.2} parent=5 // pred_fallthru
        _
      %p304 = scmp.le.s32.totalorder 1, %s20
      %p305 = scmp.lt.s32.totalorder %s20, 3
      %p306 = pnand %p304, %p305
      %p307 = pneg %p306
      // Predicated region
      $region41: #{lm_forward.2} parent=5 // pred_check
        _
      $region42: #{lm_forward.2} parent=5 // pred_check_branch
        %309 = sbr.rel (%p306) target = $region44
      $region43: #{lm_forward.2} parent=5 // pred_region
        %s310 = ssub.s32 %s20, 1
        %s311 = sand.u32 %s80, 1
        %s312 = scalar_lea.sflag [#allocation4], %s311
        %s313 = sand.u32 %s80, 1
        %s314 = smul.addr %s313, 192
        %s315 = scalar_lea.vmem [#allocation3], %s314
        // Predicated region
        $region45: #{lm_forward.2} parent=43 // pred_check
          %p316 = pneg %p93
        $region46: #{lm_forward.2} parent=43 // pred_check_branch
          %318 = sbr.rel (%p316) target = $region48
        $region47: #{lm_forward.2} parent=43 // pred_region
          %319 = dma.done %s312, 3072
        $region48: #{lm_forward.2} parent=43 // pred_fallthru
          _
        %s320 = sand.u32 %s106, 1
        %s321 = scalar_lea.sflag [#allocation6], %s320
        %s322 = sand.u32 %s106, 1
        %s323 = smul.addr %s322, 192
        %s324 = scalar_lea.vmem [#allocation5], %s323
        // Predicated region
        $region49: #{lm_forward.2} parent=43 // pred_check
          %p325 = pneg %p119
        $region50: #{lm_forward.2} parent=43 // pred_check_branch
          %327 = sbr.rel (%p325) target = $region52
        $region51: #{lm_forward.2} parent=43 // pred_region
          %328 = dma.done %s321, 3072
        $region52: #{lm_forward.2} parent=43 // pred_fallthru
          _
        %p329 = pneg %p41
        %p330 = pneg %p38
        %p331 = scmp.lt.s32.totalorder %s25, 1
        %s332 = scalar_select %p331, %s25, 1
        %s333 = smul.addr %s332, 2
        %s334 = smul.addr %s333, 8
        %s335 = scalar_lea.vmem %s1, %s334
        %p336 = pneg %p67
        %p337 = pneg %p64
        %s338 = sand.u32 %s80, 1
        %s339 = scalar_lea.sflag [#allocation4], %s338
        %s340 = sand.u32 %s80, 1
        %s341 = smul.addr %s340, 192
        %s342 = scalar_lea.vmem [#allocation3], %s341
        %p343 = pneg %p93
        %p344 = pneg %p90
        %s345 = sand.u32 %s106, 1
        %s346 = scalar_lea.sflag [#allocation6], %s345
        %s347 = sand.u32 %s106, 1
        %s348 = smul.addr %s347, 192
        %s349 = scalar_lea.vmem [#allocation5], %s348
        %p350 = pneg %p119
        %p351 = pneg %p116
        %p352 = scmp.lt.s32.totalorder %s25, 1
        %s353 = scalar_select %p352, %s25, 1
        %s354 = smul.addr %s353, 3
        %s355 = scalar_lea.vmem %s4, %s354
        %p356 = pneg %p145
        %p357 = pneg %p142
        %p358 = scmp.lt.s32.totalorder %s25, 1
        %s359 = scalar_select %p358, %s25, 1
        %s360 = smul.addr %s359, 3
        %s361 = scalar_lea.vmem %s5, %s360
        %p362 = pneg %p171
        %p363 = pneg %p168
        %p364 = pneg %p197
        %p365 = pneg %p194
        %p366 = scmp.lt.s32.totalorder %s25, 1
        %s367 = scalar_select %p366, %s25, 1
        %s368 = smul.addr %s367, 2
        %s369 = smul.addr %s368, 8
        %s370 = scalar_lea.vmem %s6, %s369
        %p371 = pneg %p218
        %p372 = pneg %p215
        %p373 = scmp.lt.s32.totalorder %s25, 1
        %s374 = scalar_select %p373, %s25, 1
        %s375 = smul.addr %s374, 2
        %s376 = smul.addr %s375, 8
        %s377 = scalar_lea.vmem %s1, %s376
        %p378 = scmp.lt.s32.totalorder %s25, 1
        %s379 = scalar_select %p378, %s25, 1
        %s380 = smul.addr %s379, 3
        %s381 = scalar_lea.vmem %s4, %s380
        %p382 = scmp.lt.s32.totalorder %s25, 1
        %s383 = scalar_select %p382, %s25, 1
        %s384 = smul.addr %s383, 3
        %s385 = scalar_lea.vmem %s5, %s384
        %p386 = scmp.lt.s32.totalorder %s25, 1
        %s387 = scalar_select %p386, %s25, 1
        %s388 = smul.addr %s387, 2
        %s389 = smul.addr %s388, 8
        %s390 = scalar_lea.vmem %s6, %s389
        %p392 = scmp.eq.s32.totalorder %s25, 0
        // Predicated region
        $region53: #{lm_forward.2} parent=43 // pred_check
          %p393 = pneg %p392
        $region54: #{lm_forward.2} parent=43 // pred_check_branch
          %395 = sbr.rel (%p393) target = $region56
        $region55: #{lm_forward.2} parent=43 // pred_region
          %v396 = vld [vmem:[%s0] sm:$0xf]
          %v397 = vld [vmem:[%s0 + $0x4] sm:$0xf]
          %398 = vst [vmem:[#allocation2] sm:$0xf] %v396
          %399 = vst [vmem:[#allocation2 + $0x4] sm:$0xf] %v397
        $region56: #{lm_forward.2} parent=43 // pred_fallthru
          _
        %v400 = vld [vmem:[#allocation2] sm:$0xf]
        %v401 = vld [vmem:[#allocation2 + $0x4] sm:$0xf]
        %v402 = vld [vmem:[%s377] sm:$0xff]
        %v403 = vld [vmem:[%s377 + $0x8] sm:$0xff]
        %v404 = vld [vmem:[%s315] sm:$0xff]
        %v405 = vld [vmem:[%s315 + $0x8] sm:$0xf]
        %v406 = vld [vmem:[%s315 + $0xc] sm:$0xff]
        %v407 = vld [vmem:[%s315 + $0x14] sm:$0xf]
        %v408 = vld [vmem:[%s315 + $0x18] sm:$0xff]
        %v409 = vld [vmem:[%s315 + $0x20] sm:$0xf]
        %v410 = vld [vmem:[%s315 + $0x24] sm:$0xff]
        %v411 = vld [vmem:[%s315 + $0x2c] sm:$0xf]
        %v412 = vld [vmem:[%s315 + $0x30] sm:$0xff]
        %v413 = vld [vmem:[%s315 + $0x38] sm:$0xf]
        %v414 = vld [vmem:[%s315 + $0x3c] sm:$0xff]
        %v415 = vld [vmem:[%s315 + $0x44] sm:$0xf]
        %v416 = vld [vmem:[%s315 + $0x48] sm:$0xff]
        %v417 = vld [vmem:[%s315 + $0x50] sm:$0xf]
        %v418 = vld [vmem:[%s315 + $0x54] sm:$0xff]
        %v419 = vld [vmem:[%s315 + $0x5c] sm:$0xf]
        %v420 = vld [vmem:[%s315 + $0x60] sm:$0xff]
        %v421 = vld [vmem:[%s315 + $0x68] sm:$0xf]
        %v422 = vld [vmem:[%s315 + $0x6c] sm:$0xff]
        %v423 = vld [vmem:[%s315 + $0x74] sm:$0xf]
        %v424 = vld [vmem:[%s315 + $0x78] sm:$0xff]
        %v425 = vld [vmem:[%s315 + $0x80] sm:$0xf]
        %v426 = vld [vmem:[%s315 + $0x84] sm:$0xff]
        %v427 = vld [vmem:[%s315 + $0x8c] sm:$0xf]
        %v428 = vld [vmem:[%s315 + $0x90] sm:$0xff]
        %v429 = vld [vmem:[%s315 + $0x98] sm:$0xf]
        %v430 = vld [vmem:[%s315 + $0x9c] sm:$0xff]
        %v431 = vld [vmem:[%s315 + $0xa4] sm:$0xf]
        %v432 = vld [vmem:[%s315 + $0xa8] sm:$0xff]
        %v433 = vld [vmem:[%s315 + $0xb0] sm:$0xf]
        %v434 = vld [vmem:[%s315 + $0xb4] sm:$0xff]
        %v435 = vld [vmem:[%s315 + $0xbc] sm:$0xf]
        %v436 = vld [vmem:[%s381] sm:$0x7]
        %v438 = vlaneseq
        %v439 = vshrl.u32 %v438, 7
        %v440 = vsub.s32 0, %v439
        %v441 = vrot.slane %v436, %v440
        %v442 = vlaneseq
        %v443 = vshrl.u32 %v442, 7
        %v444 = vsub.s32 1, %v443
        %v445 = vrot.slane %v436, %v444
        %v446 = vlaneseq
        %v447 = vshrl.u32 %v446, 7
        %v448 = vsub.s32 2, %v447
        %v449 = vrot.slane %v436, %v448
        %v455 = vunpack.c.l.b16 %v400
        %v456 = vunpack.c.l.b16 %v401
        %v457 = vpack.c.b16 %v456, %v455
        %v491 = vunpack.c.l.b16 %v404
        %v492 = vunpack.c.h.b16 %v404
        %v493 = vunpack.c.l.b16 %v405
        %v494 = vunpack.c.l.b16 %v406
        %v495 = vunpack.c.h.b16 %v406
        %v496 = vunpack.c.l.b16 %v407
        %v497 = vunpack.c.l.b16 %v408
        %v498 = vunpack.c.h.b16 %v408
        %v499 = vunpack.c.l.b16 %v409
        %v500 = vunpack.c.l.b16 %v410
        %v501 = vunpack.c.h.b16 %v410
        %v502 = vunpack.c.l.b16 %v411
        %v503 = vunpack.c.l.b16 %v412
        %v504 = vunpack.c.h.b16 %v412
        %v505 = vunpack.c.l.b16 %v413
        %v506 = vunpack.c.l.b16 %v414
        %v507 = vunpack.c.h.b16 %v414
        %v508 = vunpack.c.l.b16 %v415
        %v509 = vunpack.c.l.b16 %v416
        %v510 = vunpack.c.h.b16 %v416
        %v511 = vunpack.c.l.b16 %v417
        %v512 = vunpack.c.l.b16 %v418
        %v513 = vunpack.c.h.b16 %v418
        %v514 = vunpack.c.l.b16 %v419
        %v515 = vunpack.c.l.b16 %v420
        %v516 = vunpack.c.h.b16 %v420
        %v517 = vunpack.c.l.b16 %v421
        %v518 = vunpack.c.l.b16 %v422
        %v519 = vunpack.c.h.b16 %v422
        %v520 = vunpack.c.l.b16 %v423
        %v521 = vunpack.c.l.b16 %v424
        %v522 = vunpack.c.h.b16 %v424
        %v523 = vunpack.c.l.b16 %v425
        %v524 = vunpack.c.l.b16 %v426
        %v525 = vunpack.c.h.b16 %v426
        %v526 = vunpack.c.l.b16 %v427
        %v527 = vunpack.c.l.b16 %v428
        %v528 = vunpack.c.h.b16 %v428
        %v529 = vunpack.c.l.b16 %v429
        %v530 = vunpack.c.l.b16 %v430
        %v531 = vunpack.c.h.b16 %v430
        %v532 = vunpack.c.l.b16 %v431
        %v533 = vunpack.c.l.b16 %v432
        %v534 = vunpack.c.h.b16 %v432
        %v535 = vunpack.c.l.b16 %v433
        %v536 = vunpack.c.l.b16 %v434
        %v537 = vunpack.c.h.b16 %v434
        %v538 = vunpack.c.l.b16 %v435
        %v539 = vpack.c.b16 %v494, %v491
        %v540 = vpack.c.b16 %v495, %v492
        %v541 = vpack.c.b16 %v496, %v493
        %v542 = vpack.c.b16 %v500, %v497
        %v543 = vpack.c.b16 %v501, %v498
        %v544 = vpack.c.b16 %v502, %v499
        %v545 = vpack.c.b16 %v506, %v503
        %v546 = vpack.c.b16 %v507, %v504
        %v547 = vpack.c.b16 %v508, %v505
        %v548 = vpack.c.b16 %v512, %v509
        %v549 = vpack.c.b16 %v513, %v510
        %v550 = vpack.c.b16 %v514, %v511
        %v551 = vpack.c.b16 %v518, %v515
        %v552 = vpack.c.b16 %v519, %v516
        %v553 = vpack.c.b16 %v520, %v517
        %v554 = vpack.c.b16 %v524, %v521
        %v555 = vpack.c.b16 %v525, %v522
        %v556 = vpack.c.b16 %v526, %v523
        %v557 = vpack.c.b16 %v530, %v527
        %v558 = vpack.c.b16 %v531, %v528
        %v559 = vpack.c.b16 %v532, %v529
        %v560 = vpack.c.b16 %v536, %v533
        %v561 = vpack.c.b16 %v537, %v534
        %v562 = vpack.c.b16 %v538, %v535
        %587 = vmatprep.subr.bf16.mxu0 %v561
        %588 = vmatpush1.bf16.msra.mxu0 %v560
        %589 = vmatprep.subr.bf16.mxu0 %v558
        %590 = vmatpush1.bf16.msra.mxu0 %v557
        %591 = vmatprep.subr.bf16.mxu0 %v555
        %592 = vmatpush1.bf16.msra.mxu0 %v554
        %593 = vmatprep.subr.bf16.mxu0 %v552
        %594 = vmatpush1.bf16.msra.mxu0 %v551
        %595 = vmatprep.subr.bf16.mxu0 %v549
        %596 = vmatpush1.bf16.msra.mxu0 %v548
        %597 = vmatprep.subr.bf16.mxu0 %v546
        %598 = vmatpush1.bf16.msra.mxu0 %v545
        %599 = vmatprep.subr.bf16.mxu0 %v543
        %600 = vmatpush1.bf16.msra.mxu0 %v542
        %601 = vmatprep.subr.bf16.mxu0 %v540
        %602 = vmatpush1.bf16.msra.mxu0 %v539
        %603 = vmatprep.subr.bf16.mxu0 0
        %604 = vmatpush2.bf16.msra.mxu0 0
        %605 = vmatprep.subr.bf16.mxu0 0
        %606 = vmatpush2.bf16.msra.mxu0 0
        %607 = vmatprep.subr.bf16.mxu0 0
        %608 = vmatpush2.bf16.msra.mxu0 0
        %609 = vmatprep.subr.bf16.mxu0 0
        %610 = vmatpush2.bf16.msra.mxu0 0
        %611 = vmatprep.subr.bf16.mxu0 0
        %612 = vmatpush2.bf16.msra.mxu0 0
        %613 = vmatprep.subr.bf16.mxu0 0
        %614 = vmatpush2.bf16.msra.mxu0 0
        %615 = vmatprep.subr.bf16.mxu0 0
        %616 = vmatpush2.bf16.msra.mxu0 0
        %617 = vmatprep.subr.bf16.mxu0 0
        %618 = vmatpush2.bf16.msra.mxu0 0
        %619 = vmatprep.mubr.bf16.mxu0 0
        %620 = vmatmul.mubr.bf16.gmra.mxu0 %v457
        %v621 = vpop.f32.mrf.mxu0
        %v622 = vadd.f32 %v441, %v621
        %v623 = vpop.f32.mrf.mxu0
        %v624 = vadd.f32 %v445, %v623
        %v625 = vpop.f32.mrf.mxu0
        %v626 = vadd.f32 %v441, %v625
        %v627 = vpop.f32.mrf.mxu0
        %v628 = vadd.f32 %v445, %v627
        %629 = vdwg.mxu0
        %630 = vmatprep.subr.bf16.mxu0 0
        %631 = vmatpush1.bf16.msra.mxu0 %v562
        %632 = vmatprep.subr.bf16.mxu0 0
        %633 = vmatpush1.bf16.msra.mxu0 %v559
        %634 = vmatprep.subr.bf16.mxu0 0
        %635 = vmatpush1.bf16.msra.mxu0 %v556
        %636 = vmatprep.subr.bf16.mxu0 0
        %637 = vmatpush1.bf16.msra.mxu0 %v553
        %638 = vmatprep.subr.bf16.mxu0 0
        %639 = vmatpush1.bf16.msra.mxu0 %v550
        %640 = vmatprep.subr.bf16.mxu0 0
        %641 = vmatpush1.bf16.msra.mxu0 %v547
        %642 = vmatprep.subr.bf16.mxu0 0
        %643 = vmatpush1.bf16.msra.mxu0 %v544
        %644 = vmatprep.subr.bf16.mxu0 0
        %645 = vmatpush1.bf16.msra.mxu0 %v541
        %646 = vmatprep.subr.bf16.mxu0 0
        %647 = vmatpush2.bf16.msra.mxu0 0
        %648 = vmatprep.subr.bf16.mxu0 0
        %649 = vmatpush2.bf16.msra.mxu0 0
        %650 = vmatprep.subr.bf16.mxu0 0
        %651 = vmatpush2.bf16.msra.mxu0 0
        %652 = vmatprep.subr.bf16.mxu0 0
        %653 = vmatpush2.bf16.msra.mxu0 0
        %654 = vmatprep.subr.bf16.mxu0 0
        %655 = vmatpush2.bf16.msra.mxu0 0
        %656 = vmatprep.subr.bf16.mxu0 0
        %657 = vmatpush2.bf16.msra.mxu0 0
        %658 = vmatprep.subr.bf16.mxu0 0
        %659 = vmatpush2.bf16.msra.mxu0 0
        %660 = vmatprep.subr.bf16.mxu0 0
        %661 = vmatpush2.bf16.msra.mxu0 0
        %662 = vmatprep.mubr.bf16.mxu0 0
        %663 = vmatmul.mubr.bf16.gmra.mxu0 %v457
        %v664 = vpop.f32.mrf.mxu0
        %v665 = vadd.f32 %v449, %v664
        %v666 = vpop.f32.mrf.mxu0
        %v667 = vpop.f32.mrf.mxu0
        %v668 = vadd.f32 %v449, %v667
        %v669 = vpop.f32.mrf.mxu0
        %670 = vdwg.mxu0
        %v671 = vpack.c.bf16 %v403, %v402
        %v672 = vld [vmem:[%s324] sm:$0xff]
        %v673 = vld [vmem:[%s324 + $0x8] sm:$0xf]
        %v674 = vld [vmem:[%s324 + $0xc] sm:$0xff]
        %v675 = vld [vmem:[%s324 + $0x14] sm:$0xf]
        %v676 = vld [vmem:[%s324 + $0x18] sm:$0xff]
        %v677 = vld [vmem:[%s324 + $0x20] sm:$0xf]
        %v678 = vld [vmem:[%s324 + $0x24] sm:$0xff]
        %v679 = vld [vmem:[%s324 + $0x2c] sm:$0xf]
        %v680 = vld [vmem:[%s324 + $0x30] sm:$0xff]
        %v681 = vld [vmem:[%s324 + $0x38] sm:$0xf]
        %v682 = vld [vmem:[%s324 + $0x3c] sm:$0xff]
        %v683 = vld [vmem:[%s324 + $0x44] sm:$0xf]
        %v684 = vld [vmem:[%s324 + $0x48] sm:$0xff]
        %v685 = vld [vmem:[%s324 + $0x50] sm:$0xf]
        %v686 = vld [vmem:[%s324 + $0x54] sm:$0xff]
        %v687 = vld [vmem:[%s324 + $0x5c] sm:$0xf]
        %v688 = vld [vmem:[%s324 + $0x60] sm:$0xff]
        %v689 = vld [vmem:[%s324 + $0x68] sm:$0xf]
        %v690 = vld [vmem:[%s324 + $0x6c] sm:$0xff]
        %v691 = vld [vmem:[%s324 + $0x74] sm:$0xf]
        %v692 = vld [vmem:[%s324 + $0x78] sm:$0xff]
        %v693 = vld [vmem:[%s324 + $0x80] sm:$0xf]
        %v694 = vld [vmem:[%s324 + $0x84] sm:$0xff]
        %v695 = vld [vmem:[%s324 + $0x8c] sm:$0xf]
        %v696 = vld [vmem:[%s324 + $0x90] sm:$0xff]
        %v697 = vld [vmem:[%s324 + $0x98] sm:$0xf]
        %v698 = vld [vmem:[%s324 + $0x9c] sm:$0xff]
        %v699 = vld [vmem:[%s324 + $0xa4] sm:$0xf]
        %v700 = vld [vmem:[%s324 + $0xa8] sm:$0xff]
        %v701 = vld [vmem:[%s324 + $0xb0] sm:$0xf]
        %v702 = vld [vmem:[%s324 + $0xb4] sm:$0xff]
        %v703 = vld [vmem:[%s324 + $0xbc] sm:$0xf]
        %v704 = vld [vmem:[%s385] sm:$0x7]
        %v706 = vlaneseq
        %v707 = vshrl.u32 %v706, 7
        %v708 = vsub.s32 0, %v707
        %v709 = vrot.slane %v704, %v708
        %v710 = vlaneseq
        %v711 = vshrl.u32 %v710, 7
        %v712 = vsub.s32 1, %v711
        %v713 = vrot.slane %v704, %v712
        %v714 = vlaneseq
        %v715 = vshrl.u32 %v714, 7
        %v716 = vsub.s32 2, %v715
        %v717 = vrot.slane %v704, %v716
        %v753 = vunpack.c.l.b16 %v672
        %v754 = vunpack.c.h.b16 %v672
        %v755 = vunpack.c.l.b16 %v673
        %v756 = vunpack.c.l.b16 %v674
        %v757 = vunpack.c.h.b16 %v674
        %v758 = vunpack.c.l.b16 %v675
        %v759 = vunpack.c.l.b16 %v676
        %v760 = vunpack.c.h.b16 %v676
        %v761 = vunpack.c.l.b16 %v677
        %v762 = vunpack.c.l.b16 %v678
        %v763 = vunpack.c.h.b16 %v678
        %v764 = vunpack.c.l.b16 %v679
        %v765 = vunpack.c.l.b16 %v680
        %v766 = vunpack.c.h.b16 %v680
        %v767 = vunpack.c.l.b16 %v681
        %v768 = vunpack.c.l.b16 %v682
        %v769 = vunpack.c.h.b16 %v682
        %v770 = vunpack.c.l.b16 %v683
        %v771 = vunpack.c.l.b16 %v684
        %v772 = vunpack.c.h.b16 %v684
        %v773 = vunpack.c.l.b16 %v685
        %v774 = vunpack.c.l.b16 %v686
        %v775 = vunpack.c.h.b16 %v686
        %v776 = vunpack.c.l.b16 %v687
        %v777 = vunpack.c.l.b16 %v688
        %v778 = vunpack.c.h.b16 %v688
        %v779 = vunpack.c.l.b16 %v689
        %v780 = vunpack.c.l.b16 %v690
        %v781 = vunpack.c.h.b16 %v690
        %v782 = vunpack.c.l.b16 %v691
        %v783 = vunpack.c.l.b16 %v692
        %v784 = vunpack.c.h.b16 %v692
        %v785 = vunpack.c.l.b16 %v693
        %v786 = vunpack.c.l.b16 %v694
        %v787 = vunpack.c.h.b16 %v694
        %v788 = vunpack.c.l.b16 %v695
        %v789 = vunpack.c.l.b16 %v696
        %v790 = vunpack.c.h.b16 %v696
        %v791 = vunpack.c.l.b16 %v697
        %v792 = vunpack.c.l.b16 %v698
        %v793 = vunpack.c.h.b16 %v698
        %v794 = vunpack.c.l.b16 %v699
        %v795 = vunpack.c.l.b16 %v700
        %v796 = vunpack.c.h.b16 %v700
        %v797 = vunpack.c.l.b16 %v701
        %v798 = vunpack.c.l.b16 %v702
        %v799 = vunpack.c.h.b16 %v702
        %v800 = vunpack.c.l.b16 %v703
        %v801 = vpack.c.b16 %v756, %v753
        %v802 = vpack.c.b16 %v757, %v754
        %v803 = vpack.c.b16 %v758, %v755
        %v804 = vpack.c.b16 %v762, %v759
        %v805 = vpack.c.b16 %v763, %v760
        %v806 = vpack.c.b16 %v764, %v761
        %v807 = vpack.c.b16 %v768, %v765
        %v808 = vpack.c.b16 %v769, %v766
        %v809 = vpack.c.b16 %v770, %v767
        %v810 = vpack.c.b16 %v774, %v771
        %v811 = vpack.c.b16 %v775, %v772
        %v812 = vpack.c.b16 %v776, %v773
        %v813 = vpack.c.b16 %v780, %v777
        %v814 = vpack.c.b16 %v781, %v778
        %v815 = vpack.c.b16 %v782, %v779
        %v816 = vpack.c.b16 %v786, %v783
        %v817 = vpack.c.b16 %v787, %v784
        %v818 = vpack.c.b16 %v788, %v785
        %v819 = vpack.c.b16 %v792, %v789
        %v820 = vpack.c.b16 %v793, %v790
        %v821 = vpack.c.b16 %v794, %v791
        %v822 = vpack.c.b16 %v798, %v795
        %v823 = vpack.c.b16 %v799, %v796
        %v824 = vpack.c.b16 %v800, %v797
        %849 = vmatprep.subr.bf16.mxu0 %v823
        %850 = vmatpush1.bf16.msra.mxu0 %v822
        %851 = vmatprep.subr.bf16.mxu0 %v820
        %852 = vmatpush1.bf16.msra.mxu0 %v819
        %853 = vmatprep.subr.bf16.mxu0 %v817
        %854 = vmatpush1.bf16.msra.mxu0 %v816
        %855 = vmatprep.subr.bf16.mxu0 %v814
        %856 = vmatpush1.bf16.msra.mxu0 %v813
        %857 = vmatprep.subr.bf16.mxu0 %v811
        %858 = vmatpush1.bf16.msra.mxu0 %v810
        %859 = vmatprep.subr.bf16.mxu0 %v808
        %860 = vmatpush1.bf16.msra.mxu0 %v807
        %861 = vmatprep.subr.bf16.mxu0 %v805
        %862 = vmatpush1.bf16.msra.mxu0 %v804
        %863 = vmatprep.subr.bf16.mxu0 %v802
        %864 = vmatpush1.bf16.msra.mxu0 %v801
        %865 = vmatprep.subr.bf16.mxu0 0
        %866 = vmatpush2.bf16.msra.mxu0 0
        %867 = vmatprep.subr.bf16.mxu0 0
        %868 = vmatpush2.bf16.msra.mxu0 0
        %869 = vmatprep.subr.bf16.mxu0 0
        %870 = vmatpush2.bf16.msra.mxu0 0
        %871 = vmatprep.subr.bf16.mxu0 0
        %872 = vmatpush2.bf16.msra.mxu0 0
        %873 = vmatprep.subr.bf16.mxu0 0
        %874 = vmatpush2.bf16.msra.mxu0 0
        %875 = vmatprep.subr.bf16.mxu0 0
        %876 = vmatpush2.bf16.msra.mxu0 0
        %877 = vmatprep.subr.bf16.mxu0 0
        %878 = vmatpush2.bf16.msra.mxu0 0
        %879 = vmatprep.subr.bf16.mxu0 0
        %880 = vmatpush2.bf16.msra.mxu0 0
        %881 = vmatprep.mubr.bf16.mxu0 0
        %882 = vmatmul.mubr.bf16.gmra.mxu0 %v671
        %v883 = vpop.f32.mrf.mxu0
        %v884 = vadd.f32 %v709, %v883
        %v885 = vpop.f32.mrf.mxu0
        %v886 = vadd.f32 %v713, %v885
        %v887 = vpop.f32.mrf.mxu0
        %v888 = vadd.f32 %v709, %v887
        %v889 = vpop.f32.mrf.mxu0
        %v890 = vadd.f32 %v713, %v889
        %891 = vdwg.mxu0
        %892 = vmatprep.subr.bf16.mxu0 0
        %893 = vmatpush1.bf16.msra.mxu0 %v824
        %894 = vmatprep.subr.bf16.mxu0 0
        %895 = vmatpush1.bf16.msra.mxu0 %v821
        %896 = vmatprep.subr.bf16.mxu0 0
        %897 = vmatpush1.bf16.msra.mxu0 %v818
        %898 = vmatprep.subr.bf16.mxu0 0
        %899 = vmatpush1.bf16.msra.mxu0 %v815
        %900 = vmatprep.subr.bf16.mxu0 0
        %901 = vmatpush1.bf16.msra.mxu0 %v812
        %902 = vmatprep.subr.bf16.mxu0 0
        %903 = vmatpush1.bf16.msra.mxu0 %v809
        %904 = vmatprep.subr.bf16.mxu0 0
        %905 = vmatpush1.bf16.msra.mxu0 %v806
        %906 = vmatprep.subr.bf16.mxu0 0
        %907 = vmatpush1.bf16.msra.mxu0 %v803
        %908 = vmatprep.subr.bf16.mxu0 0
        %909 = vmatpush2.bf16.msra.mxu0 0
        %910 = vmatprep.subr.bf16.mxu0 0
        %911 = vmatpush2.bf16.msra.mxu0 0
        %912 = vmatprep.subr.bf16.mxu0 0
        %913 = vmatpush2.bf16.msra.mxu0 0
        %914 = vmatprep.subr.bf16.mxu0 0
        %915 = vmatpush2.bf16.msra.mxu0 0
        %916 = vmatprep.subr.bf16.mxu0 0
        %917 = vmatpush2.bf16.msra.mxu0 0
        %918 = vmatprep.subr.bf16.mxu0 0
        %919 = vmatpush2.bf16.msra.mxu0 0
        %920 = vmatprep.subr.bf16.mxu0 0
        %921 = vmatpush2.bf16.msra.mxu0 0
        %922 = vmatprep.subr.bf16.mxu0 0
        %923 = vmatpush2.bf16.msra.mxu0 0
        %924 = vmatprep.mubr.bf16.mxu0 0
        %925 = vmatmul.mubr.bf16.gmra.mxu0 %v671
        %v926 = vpop.f32.mrf.mxu0
        %v927 = vadd.f32 %v717, %v926
        %v928 = vpop.f32.mrf.mxu0
        %v929 = vpop.f32.mrf.mxu0
        %v930 = vadd.f32 %v717, %v929
        %v931 = vpop.f32.mrf.mxu0
        %932 = vdwg.mxu0
        %v933 = vadd.f32 %v622, %v884
        %v934 = vadd.f32 %v626, %v888
        %v935 = vxor.u32 %v933, 2147483648
        %v936 = vxor.u32 %v934, 2147483648
        %v937 = vmul.f32 %v935, 1.442695
        %v938 = vpow.pop %v937
        %v939 = vmul.f32 %v936, 1.442695
        %v940 = vpow.pop %v939
        %v941 = vadd.f32 %v938, 1.0
        %v942 = vadd.f32 %v940, 1.0
        %v943 = vrcp.pop %v941
        %v944 = vmul.f32 1.0, %v943
        %v945 = vrcp.pop %v942
        %v946 = vmul.f32 1.0, %v945
        %v947 = vadd.f32 %v624, %v886
        %v948 = vadd.f32 %v628, %v890
        %v949 = vxor.u32 %v947, 2147483648
        %v950 = vxor.u32 %v948, 2147483648
        %v951 = vmul.f32 %v949, 1.442695
        %v952 = vpow.pop %v951
        %v953 = vmul.f32 %v950, 1.442695
        %v954 = vpow.pop %v953
        %v955 = vadd.f32 %v952, 1.0
        %v956 = vadd.f32 %v954, 1.0
        %v957 = vrcp.pop %v955
        %v958 = vmul.f32 1.0, %v957
        %v959 = vrcp.pop %v956
        %v960 = vmul.f32 1.0, %v959
        %v961 = vmul.f32 %v944, %v927
        %v962 = vmul.f32 %v946, %v930
        %v963 = vadd.f32 %v665, %v961
        %v964 = vadd.f32 %v668, %v962
        %v965 = vtanh.pop %v963
        %v966 = vtanh.pop %v964
        %v967 = vsub.f32 1.0, %v958
        %v968 = vsub.f32 1.0, %v960
        %v969 = vmul.f32 %v967, %v965
        %v970 = vmul.f32 %v968, %v966
        %v971 = vmul.f32 %v958, %v402
        %v972 = vmul.f32 %v960, %v403
        %v973 = vadd.f32 %v969, %v971
        %v974 = vadd.f32 %v970, %v972
        %975 = vst [vmem:[%s390] sm:$0xff] %v973
        %976 = vst [vmem:[%s390 + $0x8] sm:$0xff] %v974
        %v977 = vpack.c.bf16 %v974, %v973
        %v979 = vunpack.c.l.b16 %v977
        %v980 = vunpack.c.h.b16 %v977
        %v981 = vpack.c.b16 %v979, %v979
        %v982 = vpack.c.b16 %v980, %v980
        %985 = vst [vmem:[#allocation2] sm:$0xf] %v981
        %986 = vst [vmem:[#allocation2 + $0x4] sm:$0xf] %v982
        %987 = vst [vmem:[%s7] sm:$0xf] %v981
        %988 = vst [vmem:[%s7 + $0x4] sm:$0xf] %v982
        %p989 = scmp.lt.s32.totalorder %s25, 1
        %s990 = scalar_select %p989, %s25, 1
        %s991 = smul.addr %s990, 2
        %s992 = smul.addr %s991, 8
        %s993 = scalar_lea.vmem %s6, %s992
        // Predicated region
        $region57: #{lm_forward.2} parent=43 // pred_check
          %p994 = pneg %p194
        $region58: #{lm_forward.2} parent=43 // pred_check_branch
          %996 = sbr.rel (%p994) target = $region60
        $region59: #{lm_forward.2} parent=43 // pred_region
          _
        $region60: #{lm_forward.2} parent=43 // pred_fallthru
          _
        // Predicated region
        $region61: #{lm_forward.2} parent=43 // pred_check
          %p997 = pneg %p215
        $region62: #{lm_forward.2} parent=43 // pred_check_branch
          %999 = sbr.rel (%p997) target = $region64
        $region63: #{lm_forward.2} parent=43 // pred_region
          _
        $region64: #{lm_forward.2} parent=43 // pred_fallthru
          _
        // Predicated region
        $region65: #{lm_forward.2} parent=43 // pred_check
          %p1000 = pneg %p215
        $region66: #{lm_forward.2} parent=43 // pred_check_branch
          %1002 = sbr.rel (%p1000) target = $region68
        $region67: #{lm_forward.2} parent=43 // pred_region
          _
        $region68: #{lm_forward.2} parent=43 // pred_fallthru
          _
      $region44: #{lm_forward.2} parent=5 // pred_fallthru
        _
      %p1003 = scmp.le.s32.totalorder 2, %s20
      // Predicated region
      $region69: #{lm_forward.2} parent=5 // pred_check
        %p1004 = pneg %p1003
      $region70: #{lm_forward.2} parent=5 // pred_check_branch
        %1006 = sbr.rel (%p1004) target = $region72
      $region71: #{lm_forward.2} parent=5 // pred_region
        %s1007 = ssub.s32 %s20, 2
        // Predicated region
        $region73: #{lm_forward.2} parent=71 // pred_check
          %p1008 = pneg %p200
        $region74: #{lm_forward.2} parent=71 // pred_check_branch
          %1010 = sbr.rel (%p1008) target = $region76
        $region75: #{lm_forward.2} parent=71 // pred_region
          %p1011 = scmp.lt.s32.totalorder %s26, 1
          %s1012 = scalar_select %p1011, %s26, 1
          %s1013 = smul.addr %s1012, 2
          %s1014 = smul.addr %s1013, 8
          %s1015 = scalar_lea.vmem %s6, %s1014
        $region76: #{lm_forward.2} parent=71 // pred_fallthru
          _
      $region72: #{lm_forward.2} parent=5 // pred_fallthru
        _
    $region6: #{lm_forward.2} parent=1 // loop_footer
      %s24 = sadd.s32 1, %s20
    $region7: #{lm_forward.2} parent=1 // loop_footer_branch
      %19 = sbr.rel target = $region3
    $region8: #{lm_forward.2} parent=1 // loop_exit
      _
    %1016 = vsyncpa [#allocation4], 1
    %s1017 = scalar_lea.sflag [#allocation4], 1
    %1018 = vsyncpa %s1017, 1
    %1019 = vsyncpa [#allocation6], 1
    %s1020 = scalar_lea.sflag [#allocation6], 1
    %1021 = vsyncpa %s1020, 1

</llo_original>
